<compile_context>
chip_gen: v7x
topology: tpu7x:2x2x1
jax: 0.10.0
libtpu: 0.0.40
codegen_flags: <defaults>
</compile_context>

<pallas_src>
import jax
import jax.numpy as jnp
from jax import lax
from jax.experimental import pallas as pl
from jax.experimental.pallas import tpu as pltpu


def _tpu_vmem_capacity_bytes():
    try:
        return int(pltpu.get_tpu_info().vmem_capacity_bytes)
    except Exception:        # non-TPU trace or field rename: fall back to defaults
        return None


def _pick_tile_h(H, W, target_rows):
    """Largest TH dividing H with TH*W <= target_rows.

    Any TH is layout-legal now that the output block is (1, TH, W, C2p)."""
    best = 1
    for th in range(1, H + 1):
        if H % th == 0 and th * W <= target_rows:
            best = th
    return best


def _pick_cin_chunk(Cin, max_chunk):
    """Cin-chunk size for the K-tiled 3x3 contraction.

    Must equal Cin or be a multiple of 128 (lane-dim BlockSpec rule)."""
    if Cin <= max_chunk:
        return Cin
    for ck in range(max_chunk - max_chunk % 128, 0, -128):
        if Cin % ck == 0:
            return ck
    return Cin          # no legal chunking: keep the full contraction resident


def _make_kernel(TH, W, Ck, C1, C2p, nK):
    K3 = 3 * Ck
    M = TH * W

    def _finalize(acc, b_ref, w2_ref, b2_ref, o_ref):
        # BN scale already folded into w1 on the host; only the f32 bias add,
        # LeakyReLU(0.1) and the 1x1 conv (channel matmul) remain.
        y = acc + b_ref[0]
        y = jnp.where(y > 0, y, 0.1 * y)
        out = jnp.dot(y.astype(jnp.bfloat16), w2_ref[...],
                      preferred_element_type=jnp.float32) + b2_ref[0]
        # TODO(synk): optionally emit bf16 output and fuse the trailing slice
        # + transpose into the consumer to cut output HBM writeback further.
        o_ref[0] = out.reshape(TH, W, C2p).astype(o_ref.dtype)

    def kernel(xp_ref, w1_ref, b_ref, w2_ref, b2_ref, o_ref, *scratch):
        # xp_ref : (1, H+2, W+2, Ck)  bf16  zero-padded image, one Cin chunk
        # w1_ref : (1, 3, 3*Ck, C1)   bf16  BN-folded 3x3 weights (dy, dx|cin)
        # b_ref  : (1, C1)            f32   folded BN shift + conv1 bias
        # w2_ref : (C1, C2p)          bf16  1x1 conv weights, lane-padded
        # b2_ref : (1, C2p)           f32   1x1 conv bias, lane-padded
        # o_ref  : (1, TH, W, C2p)    f32   output strip (lane-dense)
        h = pl.program_id(1)
        row0 = pl.multiple_of(h * TH, TH)
        xs = xp_ref[0, pl.ds(row0, TH + 2), :, :]            # (TH+2, W+2, Ck)

        # Three dx-shifted views stacked on channels.  At production Cin
        # (multiples of 128) this is a clean lane-offset copy; for Cin < 128
        # (toy sizes) it costs one packed-lane relayout per strip.
        x_sh = jnp.concatenate(
            [xs[:, 0:W, :], xs[:, 1:W + 1, :], xs[:, 2:W + 2, :]], axis=-1)
        # Flatten ONCE (not once per dy tap); dy taps reuse it via contiguous
        # row slices of the flattened strip.
        x_flat = x_sh.reshape((TH + 2) * W, K3)

        part = None
        for dy in range(3):                                  # static unroll
            patch = x_flat[dy * W: dy * W + M]               # (M, 3*Ck)
            d = jnp.dot(patch, w1_ref[0, dy],
                        preferred_element_type=jnp.float32)  # (M, C1)
            part = d if part is None else part + d

        if nK == 1:
            _finalize(part, b_ref, w2_ref, b2_ref, o_ref)
        else:
            (acc_ref,) = scratch
            k = pl.program_id(2)

            @pl.when(k == 0)
            def _():
                acc_ref[...] = jnp.zeros_like(acc_ref)

            acc_ref[...] += part

            @pl.when(k == nK - 1)
            def _():
                _finalize(acc_ref[...], b_ref, w2_ref, b2_ref, o_ref)

    return kernel


def scale_prediction_pallas(x_nchw, params, num_classes, *,
                            tile_h=None, max_cin_chunk=512):
    """x_nchw: (B, Cin, H, W) float32.  Returns (B, 3, H, W, num_classes+5)."""
    w1, b1, bn_gamma, bn_beta, bn_mean, bn_var, bn_eps, w2, b2 = params
    B, Cin, H, W = x_nchw.shape
    C1 = w1.shape[0]                          # 2 * in_channels
    C2 = w2.shape[0]                          # (num_classes + 5) * 3
    C2p = ((C2 + 127) // 128) * 128           # lane-dense output channels

    vmem_cap = _tpu_vmem_capacity_bytes()
    if tile_h is None:
        # Bigger strips on 128-MiB parts (v5e/v6e), tighter on v7x (64 MiB).
        target_rows = 2048 if (vmem_cap or 0) >= (96 << 20) else 1024
        tile_h = _pick_tile_h(H, W, target_rows)
    if H % tile_h != 0:
        raise ValueError(f"tile_h={tile_h} must divide H={H}")
    TH = tile_h
    nH = H // TH

    Ck = _pick_cin_chunk(Cin, max_cin_chunk)
    nK = Cin // Ck

    # ---- host-side glue: layout transforms, BN fold, lane padding, bf16 ----
    x_pad = jnp.pad(jnp.transpose(x_nchw, (0, 2, 3, 1)),
                    ((0, 0), (1, 1), (1, 1), (0, 0))).astype(jnp.bfloat16)
    # TODO(synk): at production sizes move the 1-pixel halo handling in-kernel
    # (masked boundary taps) to drop the padded-activation HBM pass entirely.
    scale_v = bn_gamma / jnp.sqrt(bn_var + bn_eps)
    bias = ((b1 - bn_mean) * scale_v + bn_beta).reshape(1, C1)     # f32
    w1f = w1 * scale_v[:, None, None, None]                        # BN fold (f32)
    w1t = jnp.transpose(w1f, (2, 3, 1, 0))                         # (dy,dx,cin,c1)
    w1t = w1t.reshape(3, 3, nK, Ck, C1)
    w1t = jnp.transpose(w1t, (2, 0, 1, 3, 4))                      # (k,dy,dx,cin,c1)
    w1t = w1t.reshape(nK, 3, 3 * Ck, C1).astype(jnp.bfloat16)
    w2_mat = jnp.transpose(w2.reshape(C2, C1), (1, 0))             # (C1, C2)
    w2_pad = jnp.pad(w2_mat, ((0, 0), (0, C2p - C2))).astype(jnp.bfloat16)
    b2_pad = jnp.pad(b2, (0, C2p - C2)).reshape(1, C2p)            # f32

    kernel = _make_kernel(TH, W, Ck, C1, C2p, nK)

    # Constant-index operands: single-buffer (index map never changes, so no
    # DMA overlap is lost; halves their resident VMEM).
    const1 = dict(pipeline_mode=pl.Buffered(1))
    w1_kwargs = const1 if nK == 1 else {}      # chunked w1 keeps default 2-deep
    in_specs = [
        # padded-image chunk: block index ignores h -> resident across strips
        pl.BlockSpec((1, H + 2, W + 2, Ck), lambda b, h, k: (b, 0, 0, k)),
        pl.BlockSpec((1, 3, 3 * Ck, C1), lambda b, h, k: (k, 0, 0, 0),
                     **w1_kwargs),
        pl.BlockSpec((1, C1), lambda b, h, k: (0, 0), **const1),
        pl.BlockSpec((C1, C2p), lambda b, h, k: (0, 0), **const1),
        pl.BlockSpec((1, C2p), lambda b, h, k: (0, 0), **const1),
    ]
    out_specs = pl.BlockSpec((1, TH, W, C2p), lambda b, h, k: (b, h, 0, 0))
    scratch_shapes = ([pltpu.VMEM((TH * W, C1), jnp.float32)] if nK > 1 else [])

    # Megacore: split on B; splitting h would duplicate the per-image input
    # DMA/residency on v7x because the image block index ignores h.
    # TODO(synk): for B == 1 on v7x, per-strip halo blocks (pl.Element rows)
    # would allow a clean h split without duplicating the image.
    h_sem = "arbitrary" if B > 1 else "parallel"
    cp_kwargs = dict(dimension_semantics=("parallel", h_sem, "arbitrary"))
    if vmem_cap is not None:
        cp_kwargs["vmem_limit_bytes"] = int(
            max(32 << 20, min(vmem_cap - (24 << 20), 112 << 20)))

    out_flat = pl.pallas_call(
        kernel,
        out_shape=jax.ShapeDtypeStruct((B, H, W, C2p), jnp.float32),
        grid_spec=pltpu.PrefetchScalarGridSpec(
            num_scalar_prefetch=0,
            grid=(B, nH, nK),
            in_specs=in_specs,
            out_specs=out_specs,
            scratch_shapes=scratch_shapes),
        compiler_params=pltpu.CompilerParams(**cp_kwargs),
    )(x_pad, w1t, bias, w2_pad, b2_pad)

    # (B,H,W,C2p) -> (B,H,W,C2) -> (B,H,W,3,nc+5) -> (B,3,H,W,nc+5)
    out = out_flat[..., :C2].reshape(B, H, W, 3, num_classes + 5)
    return jnp.transpose(out, (0, 3, 1, 2, 4))


def scale_prediction_ref(x_nchw, params, num_classes):
    """Pure-JAX reference mirroring the PyTorch module (BN in eval mode)."""
    w1, b1, bn_gamma, bn_beta, bn_mean, bn_var, bn_eps, w2, b2 = params
    B, _, H, W = x_nchw.shape
    dn = lax.conv_dimension_numbers(x_nchw.shape, w1.shape,
                                    ("NCHW", "OIHW", "NCHW"))
    y = lax.conv_general_dilated(x_nchw, w1, (1, 1), [(1, 1), (1, 1)],
                                 dimension_numbers=dn)
    y = y + b1[None, :, None, None]
    y = (y - bn_mean[None, :, None, None]) / jnp.sqrt(
        bn_var[None, :, None, None] + bn_eps)
    y = y * bn_gamma[None, :, None, None] + bn_beta[None, :, None, None]
    y = jnp.where(y > 0, y, 0.1 * y)                     # LeakyReLU(0.1)
    dn2 = lax.conv_dimension_numbers(y.shape, w2.shape,
                                     ("NCHW", "OIHW", "NCHW"))
    z = lax.conv_general_dilated(y, w2, (1, 1), [(0, 0), (0, 0)],
                                 dimension_numbers=dn2)
    z = z + b2[None, :, None, None]
    z = z.reshape(B, 3, num_classes + 5, H, W)
    return jnp.transpose(z, (0, 1, 3, 4, 2))


if __name__ == "__main__":
    def run_case(tag, B, Cin, H, W, num_classes, max_cin_chunk, key):
        C1 = 2 * Cin
        C2 = (num_classes + 5) * 3
        ks = jax.random.split(key, 8)
        x = jax.random.normal(ks[0], (B, Cin, H, W), jnp.float32)
        w1 = 0.1 * jax.random.normal(ks[1], (C1, Cin, 3, 3), jnp.float32)
        b1 = 0.1 * jax.random.normal(ks[2], (C1,), jnp.float32)
        bn_gamma = 1.0 + 0.1 * jax.random.normal(ks[3], (C1,), jnp.float32)
        bn_beta = 0.1 * jax.random.normal(ks[4], (C1,), jnp.float32)
        bn_mean = 0.05 * jax.random.normal(ks[5], (C1,), jnp.float32)
        bn_var = jnp.abs(1.0 + 0.1 * jax.random.normal(ks[6], (C1,), jnp.float32))
        bn_eps = 1e-5
        w2 = 0.1 * jax.random.normal(ks[7], (C2, C1, 1, 1), jnp.float32)
        b2 = 0.1 * jnp.arange(C2, dtype=jnp.float32) / C2
        params = (w1, b1, bn_gamma, bn_beta, bn_mean, bn_var, bn_eps, w2, b2)

        out = jax.block_until_ready(
            scale_prediction_pallas(x, params, num_classes,
                                    max_cin_chunk=max_cin_chunk))
        ref = jax.block_until_ready(scale_prediction_ref(x, params, num_classes))
        assert out.shape == (B, 3, H, W, num_classes + 5), (tag, out.shape)
        err = float(jnp.max(jnp.abs(out - ref)))
        tol = 2e-2 + 4e-2 * float(jnp.max(jnp.abs(ref)))   # bf16 MXU inputs
        assert err < tol, (tag, err, tol)

    key = jax.random.PRNGKey(0)
    k1, k2 = jax.random.split(key)
    # Small shapes consistent with the module; single Cin chunk (nK = 1).
    run_case("single_chunk", B=2, Cin=8, H=16, W=16, num_classes=3,
             max_cin_chunk=512, key=k1)
    # Exercises the K-tiled Cin-chunk contraction path (nK = 2, Ck = 128).
    run_case("k_tiled", B=1, Cin=256, H=8, W=8, num_classes=3,
             max_cin_chunk=128, key=k2)
    print("KERNEL_OK")
</pallas_src>

<mosaic_0001>
module attributes {stable_mosaic.version = 11 : i64} {
  func.func @kernel(%arg0: i32, %arg1: i32, %arg2: i32, %arg3: memref<1x18x18x8xbf16, #tpu.memory_space<vmem>>, %arg4: memref<1x3x24x16xbf16, #tpu.memory_space<vmem>>, %arg5: memref<1x16xf32, #tpu.memory_space<vmem>>, %arg6: memref<16x128xbf16, #tpu.memory_space<vmem>>, %arg7: memref<1x128xf32, #tpu.memory_space<vmem>>, %arg8: memref<1x16x16x128xf32, #tpu.memory_space<vmem>>) attributes {dimension_semantics = [#tpu.dimension_semantics<parallel>, #tpu.dimension_semantics<arbitrary>, #tpu.dimension_semantics<arbitrary>], iteration_bounds = array<i64: 2, 1, 1>, scalar_prefetch = 0 : i64, scratch_operands = 0 : i64, tpu.core_type = #tpu.core_type<tc>, window_params = [{transform_indices = @transform_0, window_bounds = array<i64: 1, 18, 18, 8>}, {pipeline_mode = #tpu.pipeline_mode<synchronous>, transform_indices = @transform_1, window_bounds = array<i64: 1, 3, 24, 16>}, {pipeline_mode = #tpu.pipeline_mode<synchronous>, transform_indices = @transform_2, window_bounds = array<i64: 1, 16>}, {pipeline_mode = #tpu.pipeline_mode<synchronous>, transform_indices = @transform_3, window_bounds = array<i64: 16, 128>}, {pipeline_mode = #tpu.pipeline_mode<synchronous>, transform_indices = @transform_4, window_bounds = array<i64: 1, 128>}, {transform_indices = @transform_5, window_bounds = array<i64: 1, 16, 16, 128>}]} {
    %c16_i32 = arith.constant 16 : i32
    %0 = arith.muli %arg1, %c16_i32 : i32
    %1 = tpu.assume_multiple %0, 16 : i32
    %c0 = arith.constant 0 : index
    %2 = arith.index_cast %1 : i32 to index
    %c0_0 = arith.constant 0 : index
    %c0_1 = arith.constant 0 : index
    %3 = vector.load %arg3[%c0, %2, %c0_0, %c0_1] : memref<1x18x18x8xbf16, #tpu.memory_space<vmem>>, vector<1x18x18x8xbf16>
    %4 = vector.shape_cast %3 : vector<1x18x18x8xbf16> to vector<18x18x8xbf16>
    %5 = vector.extract_strided_slice %4 {offsets = [0, 0, 0], sizes = [18, 16, 8], strides = [1, 1, 1]} : vector<18x18x8xbf16> to vector<18x16x8xbf16>
    %6 = vector.extract_strided_slice %4 {offsets = [0, 1, 0], sizes = [18, 16, 8], strides = [1, 1, 1]} : vector<18x18x8xbf16> to vector<18x16x8xbf16>
    %7 = vector.extract_strided_slice %4 {offsets = [0, 2, 0], sizes = [18, 16, 8], strides = [1, 1, 1]} : vector<18x18x8xbf16> to vector<18x16x8xbf16>
    %8 = tpu.concatenate %5, %6, %7 in 2 : vector<18x16x8xbf16>, vector<18x16x8xbf16>, vector<18x16x8xbf16> -> vector<18x16x24xbf16>
    %9 = vector.shape_cast %8 : vector<18x16x24xbf16> to vector<288x24xbf16>
    %10 = vector.extract_strided_slice %9 {offsets = [0, 0], sizes = [256, 24], strides = [1, 1]} : vector<288x24xbf16> to vector<256x24xbf16>
    %c0_2 = arith.constant 0 : index
    %c0_3 = arith.constant 0 : index
    %c0_4 = arith.constant 0 : index
    %c0_5 = arith.constant 0 : index
    %11 = vector.load %arg4[%c0_2, %c0_3, %c0_4, %c0_5] : memref<1x3x24x16xbf16, #tpu.memory_space<vmem>>, vector<1x1x24x16xbf16>
    %12 = vector.shape_cast %11 : vector<1x1x24x16xbf16> to vector<24x16xbf16>
    %cst = arith.constant dense<0.000000e+00> : vector<256x16xf32>
    %13 = tpu.matmul %10, %12, %cst {dimension_numbers = #tpu.dot_dimension_numbers<[1], [0], [0], [1], [0, 0, 1, 1], [], []>} : vector<256x24xbf16>, vector<24x16xbf16>, vector<256x16xf32> -> vector<256x16xf32>
    %14 = vector.extract_strided_slice %9 {offsets = [16, 0], sizes = [256, 24], strides = [1, 1]} : vector<288x24xbf16> to vector<256x24xbf16>
    %c0_6 = arith.constant 0 : index
    %c1 = arith.constant 1 : index
    %c0_7 = arith.constant 0 : index
    %c0_8 = arith.constant 0 : index
    %15 = vector.load %arg4[%c0_6, %c1, %c0_7, %c0_8] : memref<1x3x24x16xbf16, #tpu.memory_space<vmem>>, vector<1x1x24x16xbf16>
    %16 = vector.shape_cast %15 : vector<1x1x24x16xbf16> to vector<24x16xbf16>
    %cst_9 = arith.constant dense<0.000000e+00> : vector<256x16xf32>
    %17 = tpu.matmul %14, %16, %cst_9 {dimension_numbers = #tpu.dot_dimension_numbers<[1], [0], [0], [1], [0, 0, 1, 1], [], []>} : vector<256x24xbf16>, vector<24x16xbf16>, vector<256x16xf32> -> vector<256x16xf32>
    %18 = arith.addf %13, %17 : vector<256x16xf32>
    %19 = vector.extract_strided_slice %9 {offsets = [32, 0], sizes = [256, 24], strides = [1, 1]} : vector<288x24xbf16> to vector<256x24xbf16>
    %c0_10 = arith.constant 0 : index
    %c2 = arith.constant 2 : index
    %c0_11 = arith.constant 0 : index
    %c0_12 = arith.constant 0 : index
    %20 = vector.load %arg4[%c0_10, %c2, %c0_11, %c0_12] : memref<1x3x24x16xbf16, #tpu.memory_space<vmem>>, vector<1x1x24x16xbf16>
    %21 = vector.shape_cast %20 : vector<1x1x24x16xbf16> to vector<24x16xbf16>
    %cst_13 = arith.constant dense<0.000000e+00> : vector<256x16xf32>
    %22 = tpu.matmul %19, %21, %cst_13 {dimension_numbers = #tpu.dot_dimension_numbers<[1], [0], [0], [1], [0, 0, 1, 1], [], []>} : vector<256x24xbf16>, vector<24x16xbf16>, vector<256x16xf32> -> vector<256x16xf32>
    %23 = arith.addf %18, %22 : vector<256x16xf32>
    %c0_14 = arith.constant 0 : index
    %c0_15 = arith.constant 0 : index
    %24 = vector.load %arg5[%c0_14, %c0_15] : memref<1x16xf32, #tpu.memory_space<vmem>>, vector<1x16xf32>
    %25 = vector.shape_cast %24 : vector<1x16xf32> to vector<16xf32>
    %26 = vector.shape_cast %25 : vector<16xf32> to vector<1x16xf32>
    %27 = vector.broadcast %26 : vector<1x16xf32> to vector<256x16xf32>
    %28 = arith.addf %23, %27 : vector<256x16xf32>
    %cst_16 = arith.constant 0.000000e+00 : f32
    %29 = vector.broadcast %cst_16 : f32 to vector<256x16xf32>
    %30 = arith.cmpf ogt, %28, %29 : vector<256x16xf32>
    %cst_17 = arith.constant 1.000000e-01 : f32
    %31 = vector.broadcast %cst_17 : f32 to vector<256x16xf32>
    %32 = arith.mulf %31, %28 : vector<256x16xf32>
    %33 = arith.select %30, %28, %32 : vector<256x16xi1>, vector<256x16xf32>
    %34 = arith.truncf %33 : vector<256x16xf32> to vector<256x16xbf16>
    %c0_18 = arith.constant 0 : index
    %c0_19 = arith.constant 0 : index
    %35 = vector.load %arg6[%c0_18, %c0_19] : memref<16x128xbf16, #tpu.memory_space<vmem>>, vector<16x128xbf16>
    %cst_20 = arith.constant dense<0.000000e+00> : vector<256x128xf32>
    %36 = tpu.matmul %34, %35, %cst_20 {dimension_numbers = #tpu.dot_dimension_numbers<[1], [0], [0], [1], [0, 0, 1, 1], [], []>} : vector<256x16xbf16>, vector<16x128xbf16>, vector<256x128xf32> -> vector<256x128xf32>
    %c0_21 = arith.constant 0 : index
    %c0_22 = arith.constant 0 : index
    %37 = vector.load %arg7[%c0_21, %c0_22] : memref<1x128xf32, #tpu.memory_space<vmem>>, vector<1x128xf32>
    %38 = vector.shape_cast %37 : vector<1x128xf32> to vector<128xf32>
    %39 = vector.shape_cast %38 : vector<128xf32> to vector<1x128xf32>
    %40 = vector.broadcast %39 : vector<1x128xf32> to vector<256x128xf32>
    %41 = arith.addf %36, %40 : vector<256x128xf32>
    %42 = vector.shape_cast %41 : vector<256x128xf32> to vector<16x16x128xf32>
    %c0_23 = arith.constant 0 : index
    %c0_24 = arith.constant 0 : index
    %c0_25 = arith.constant 0 : index
    %c0_26 = arith.constant 0 : index
    %43 = vector.load %arg8[%c0_23, %c0_24, %c0_25, %c0_26] : memref<1x16x16x128xf32, #tpu.memory_space<vmem>>, vector<1x16x16x128xf32>
    %44 = vector.shape_cast %43 : vector<1x16x16x128xf32> to vector<16x16x128xf32>
    %45 = vector.shape_cast %42 : vector<16x16x128xf32> to vector<1x16x16x128xf32>
    tpu.vector_store %arg8[%c0_23, %c0_24, %c0_25, %c0_26], %45 {strides = array<i32>} : memref<1x16x16x128xf32, #tpu.memory_space<vmem>>, vector<1x16x16x128xf32>,
    return
  }
  func.func @transform_0(%arg0: i32, %arg1: i32, %arg2: i32) -> (i32, i32, i32, i32) {
    %c0_i32 = arith.constant 0 : i32
    %c0_i32_0 = arith.constant 0 : i32
    %c0_i32_1 = arith.constant 0 : i32
    return %arg0, %c0_i32, %c0_i32_0, %arg2 : i32, i32, i32, i32
  }
  func.func @transform_1(%arg0: i32, %arg1: i32, %arg2: i32) -> (i32, i32, i32, i32) {
    %c0_i32 = arith.constant 0 : i32
    %c0_i32_0 = arith.constant 0 : i32
    %c0_i32_1 = arith.constant 0 : i32
    %c0_i32_2 = arith.constant 0 : i32
    return %arg2, %c0_i32, %c0_i32_0, %c0_i32_1 : i32, i32, i32, i32
  }
  func.func @transform_2(%arg0: i32, %arg1: i32, %arg2: i32) -> (i32, i32) {
    %c0_i32 = arith.constant 0 : i32
    %c0_i32_0 = arith.constant 0 : i32
    %c0_i32_1 = arith.constant 0 : i32
    return %c0_i32, %c0_i32_0 : i32, i32
  }
  func.func @transform_3(%arg0: i32, %arg1: i32, %arg2: i32) -> (i32, i32) {
    %c0_i32 = arith.constant 0 : i32
    %c0_i32_0 = arith.constant 0 : i32
    %c0_i32_1 = arith.constant 0 : i32
    return %c0_i32, %c0_i32_0 : i32, i32
  }
  func.func @transform_4(%arg0: i32, %arg1: i32, %arg2: i32) -> (i32, i32) {
    %c0_i32 = arith.constant 0 : i32
    %c0_i32_0 = arith.constant 0 : i32
    %c0_i32_1 = arith.constant 0 : i32
    return %c0_i32, %c0_i32_0 : i32, i32
  }
  func.func @transform_5(%arg0: i32, %arg1: i32, %arg2: i32) -> (i32, i32, i32, i32) {
    %c0_i32 = arith.constant 0 : i32
    %c0_i32_0 = arith.constant 0 : i32
    %c0_i32_1 = arith.constant 0 : i32
    return %arg0, %arg1, %c0_i32, %c0_i32_0 : i32, i32, i32, i32
  }
}

</mosaic_0001>

<llo_original>
// kernel: tpu_custom_call.1
$region0: #{tpu_custom_call.1}
  #allocation0 [shape = 'u32[]', space=smem, size = 0x4, offset = 0x4, fixed_abs, tag = 'smem constant byte address 0x4 - core index']
  #allocation1 [shape = 'u32[144,128]{1,0:T(1,128)}', space=vmem, size = 0x12000, scoped, tag = 'internal scratch']
  %s0 = inlined_call_operand.vmem [shape: bf16[2,18,18,8], index: 0, kind: input, shape index: {}]
  %s1 = inlined_call_operand.vmem [shape: bf16[1,3,24,16], index: 1, kind: input, shape index: {}]
  %s2 = inlined_call_operand.vmem [shape: f32[1,16], index: 2, kind: input, shape index: {}]
  %s3 = inlined_call_operand.vmem [shape: bf16[16,128], index: 3, kind: input, shape index: {}]
  %s4 = inlined_call_operand.vmem [shape: f32[1,128], index: 4, kind: input, shape index: {}]
  %s5 = inlined_call_operand.hbm [shape: f32[2,16,16,128], index: 5, kind: output, shape index: {}]
  %s6 = sld [smem:[#allocation0]]
  $region53: #{tpu_custom_call.1} parent=0
    _
  %s8 = ssub.s32 1, %s6
  %s9 = scalar_select 0, %s8, %s6
  $region1: #{tpu_custom_call.1} parent=0
    #allocation2 [shape = 'u8[262144]{0}', space=vmem, size = 0x40000, scoped, tag = 'output window, operand 0']
    #allocation3 [shape = 's32[2]{0}', space=sflag, size = 0x8, scoped, tag = 'scoped memory for tpu_custom_call.1']
    %10 = vsyncpa [#allocation3], 0
    %s11 = scalar_lea.sflag [#allocation3], 1
    %12 = vsyncpa %s11, 0
    loop: start=0, step=1, limit=4
    $region2: #{tpu_custom_call.1} parent=1 // loop_pre_header
      _
    $region3: #{tpu_custom_call.1} parent=1 // loop_header
      %s14 = sphi 0, %s18
      %p15 = scmp.ge.s32.totalorder %s14, 4
      %s21 = sphi 0, %s40
      %s22 = sphi 0, %s36
      %s23 = sphi 0, %s32
      %s24 = sphi 0, %s21
      %s25 = sphi 0, %s22
      %s26 = sphi 0, %s23
      %s27 = sphi 0, %s24
      %s28 = sphi 0, %s25
      %s29 = sphi 0, %s26
      %s45 = sphi 0, %s47
      %s48 = sphi 0, %s45
      %s49 = sphi 0, %s48
      %s65 = sphi 0, %s49
      %s71 = sphi 0, %s73
      %s74 = sphi 0, %s71
      %s75 = sphi 0, %s74
      %s91 = sphi 0, %s75
      %s95 = sphi 0, %s95
      %s97 = sphi 0, %s95
      %s98 = sphi 0, %s97
      %s112 = sphi 0, %s98
      %s116 = sphi 0, %s116
      %s118 = sphi 0, %s116
      %s119 = sphi 0, %s118
      %s133 = sphi 0, %s119
      %s137 = sphi 0, %s137
      %s139 = sphi 0, %s137
      %s140 = sphi 0, %s139
      %s154 = sphi 0, %s140
      %s162 = sphi 0, %s164
      %s165 = sphi 0, %s162
      %s166 = sphi 0, %s165
      %s182 = sphi 0, %s166
    $region4: #{tpu_custom_call.1} parent=1 // loop_header_branch
      %17 = sbr.rel (%p15) target = $region8
    $region5: #{tpu_custom_call.1} parent=1 // loop_body
      %s19 = ssub.s32 %s14, 1
      %s20 = ssub.s32 %s14, 2
      %s30 = sadd.s32 1, %s23
      %p31 = scmp.ge.s32.totalorder %s30, 1
      %s32 = scalar_select %p31, 0, %s30
      %s33 = sadd.s32 1, %s22
      %s34 = scalar_select %p31, %s33, %s22
      %p35 = scmp.ge.s32.totalorder %s34, 1
      %s36 = scalar_select %p35, 0, %s34
      %s37 = sadd.s32 1, %s21
      %s38 = scalar_select %p35, %s37, %s21
      %p39 = scmp.ge.s32.totalorder %s38, 2
      %s40 = scalar_select %p39, 0, %s38
      %s41 = ssub.s32 %s21, %s40
      %s42 = ssub.s32 %s23, %s32
      %s43 = sor.u32 %s41, %s42
      %p44 = scmp.eq.s32.totalorder %s43, 0
      %s46 = sadd.s32 %s45, 1
      %s47 = scalar_select %p44, %s45, %s46
      %p50 = pneg %p44
      %p51 = scmp.eq.s32.totalorder %s14, 1
      %p52 = por %p50, %p51
      %p53 = scmp.ne.s32.totalorder %s45, %s48
      %p54 = scmp.eq.s32.totalorder %s14, 0
      %p55 = por %p53, %p54
      %p56 = scmp.ne.s32.totalorder %s45, %s48
      %p57 = scmp.eq.s32.totalorder %s19, 1
      %p58 = por %p56, %p57
      %p59 = scmp.ne.s32.totalorder %s48, %s49
      %p60 = scmp.eq.s32.totalorder %s19, 0
      %p61 = por %p59, %p60
      %p62 = scmp.ne.s32.totalorder %s48, %s49
      %p63 = scmp.eq.s32.totalorder %s20, 1
      %p64 = por %p62, %p63
      %p66 = scmp.ne.s32.totalorder %s49, %s65
      %p67 = scmp.eq.s32.totalorder %s20, 0
      %p68 = por %p66, %p67
      %s69 = ssub.s32 %s23, %s32
      %p70 = scmp.eq.s32.totalorder %s69, 0
      %s72 = sadd.s32 %s71, 1
      %s73 = scalar_select %p70, %s71, %s72
      %p76 = pneg %p70
      %p77 = scmp.eq.s32.totalorder %s14, 1
      %p78 = por %p76, %p77
      %p79 = scmp.ne.s32.totalorder %s71, %s74
      %p80 = scmp.eq.s32.totalorder %s14, 0
      %p81 = por %p79, %p80
      %p82 = scmp.ne.s32.totalorder %s71, %s74
      %p83 = scmp.eq.s32.totalorder %s19, 1
      %p84 = por %p82, %p83
      %p85 = scmp.ne.s32.totalorder %s74, %s75
      %p86 = scmp.eq.s32.totalorder %s19, 0
      %p87 = por %p85, %p86
      %p88 = scmp.ne.s32.totalorder %s74, %s75
      %p89 = scmp.eq.s32.totalorder %s20, 1
      %p90 = por %p88, %p89
      %p92 = scmp.ne.s32.totalorder %s75, %s91
      %p93 = scmp.eq.s32.totalorder %s20, 0
      %p94 = por %p92, %p93
      %s96 = sadd.s32 %s95, 1
      %p99 = scmp.eq.s32.totalorder %s14, 1
      %p100 = scmp.ne.s32.totalorder %s95, %s97
      %p101 = scmp.eq.s32.totalorder %s14, 0
      %p102 = por %p100, %p101
      %p103 = scmp.ne.s32.totalorder %s95, %s97
      %p104 = scmp.eq.s32.totalorder %s19, 1
      %p105 = por %p103, %p104
      %p106 = scmp.ne.s32.totalorder %s97, %s98
      %p107 = scmp.eq.s32.totalorder %s19, 0
      %p108 = por %p106, %p107
      %p109 = scmp.ne.s32.totalorder %s97, %s98
      %p110 = scmp.eq.s32.totalorder %s20, 1
      %p111 = por %p109, %p110
      %p113 = scmp.ne.s32.totalorder %s98, %s112
      %p114 = scmp.eq.s32.totalorder %s20, 0
      %p115 = por %p113, %p114
      %s117 = sadd.s32 %s116, 1
      %p120 = scmp.eq.s32.totalorder %s14, 1
      %p121 = scmp.ne.s32.totalorder %s116, %s118
      %p122 = scmp.eq.s32.totalorder %s14, 0
      %p123 = por %p121, %p122
      %p124 = scmp.ne.s32.totalorder %s116, %s118
      %p125 = scmp.eq.s32.totalorder %s19, 1
      %p126 = por %p124, %p125
      %p127 = scmp.ne.s32.totalorder %s118, %s119
      %p128 = scmp.eq.s32.totalorder %s19, 0
      %p129 = por %p127, %p128
      %p130 = scmp.ne.s32.totalorder %s118, %s119
      %p131 = scmp.eq.s32.totalorder %s20, 1
      %p132 = por %p130, %p131
      %p134 = scmp.ne.s32.totalorder %s119, %s133
      %p135 = scmp.eq.s32.totalorder %s20, 0
      %p136 = por %p134, %p135
      %s138 = sadd.s32 %s137, 1
      %p141 = scmp.eq.s32.totalorder %s14, 1
      %p142 = scmp.ne.s32.totalorder %s137, %s139
      %p143 = scmp.eq.s32.totalorder %s14, 0
      %p144 = por %p142, %p143
      %p145 = scmp.ne.s32.totalorder %s137, %s139
      %p146 = scmp.eq.s32.totalorder %s19, 1
      %p147 = por %p145, %p146
      %p148 = scmp.ne.s32.totalorder %s139, %s140
      %p149 = scmp.eq.s32.totalorder %s19, 0
      %p150 = por %p148, %p149
      %p151 = scmp.ne.s32.totalorder %s139, %s140
      %p152 = scmp.eq.s32.totalorder %s20, 1
      %p153 = por %p151, %p152
      %p155 = scmp.ne.s32.totalorder %s140, %s154
      %p156 = scmp.eq.s32.totalorder %s20, 0
      %p157 = por %p155, %p156
      %s158 = ssub.s32 %s21, %s40
      %s159 = ssub.s32 %s22, %s36
      %s160 = sor.u32 %s158, %s159
      %p161 = scmp.eq.s32.totalorder %s160, 0
      %s163 = sadd.s32 %s162, 1
      %s164 = scalar_select %p161, %s162, %s163
      %p167 = pneg %p161
      %p168 = scmp.eq.s32.totalorder %s14, 1
      %p169 = por %p167, %p168
      %p170 = scmp.ne.s32.totalorder %s162, %s165
      %p171 = scmp.eq.s32.totalorder %s14, 0
      %p172 = por %p170, %p171
      %p173 = scmp.ne.s32.totalorder %s162, %s165
      %p174 = scmp.eq.s32.totalorder %s19, 1
      %p175 = por %p173, %p174
      %p176 = scmp.ne.s32.totalorder %s165, %s166
      %p177 = scmp.eq.s32.totalorder %s19, 0
      %p178 = por %p176, %p177
      %p179 = scmp.ne.s32.totalorder %s165, %s166
      %p180 = scmp.eq.s32.totalorder %s20, 1
      %p181 = por %p179, %p180
      %p183 = scmp.ne.s32.totalorder %s166, %s182
      %p184 = scmp.eq.s32.totalorder %s20, 0
      %p185 = por %p183, %p184
      %p186 = scmp.le.s32.totalorder 1, %s14
      %p187 = scmp.lt.s32.totalorder %s14, 3
      %p188 = pnand %p186, %p187
      %p189 = pneg %p188
      // Predicated region
      $region9: #{tpu_custom_call.1} parent=5 // pred_check
        _
      $region10: #{tpu_custom_call.1} parent=5 // pred_check_branch
        %191 = sbr.rel (%p188) target = $region12
      $region11: #{tpu_custom_call.1} parent=5 // pred_region
        %s192 = ssub.s32 %s14, 1
        // Predicated region
        $region13: #{tpu_custom_call.1} parent=11 // pred_check
          %p193 = pneg %p87
        $region14: #{tpu_custom_call.1} parent=11 // pred_check_branch
          %195 = sbr.rel (%p193) target = $region16
        $region15: #{tpu_custom_call.1} parent=11 // pred_region
          %p196 = scmp.lt.s32.totalorder %s26, 0
          %s197 = scalar_select %p196, %s26, 0
          %s198 = smul.addr %s197, 9
          %s199 = smul.addr %s198, 4
          %s200 = scalar_lea.vmem %s1, %s199
        $region16: #{tpu_custom_call.1} parent=11 // pred_fallthru
          _
        // Predicated region
        $region17: #{tpu_custom_call.1} parent=11 // pred_check
          %p201 = pneg %p108
        $region18: #{tpu_custom_call.1} parent=11 // pred_check_branch
          %203 = sbr.rel (%p201) target = $region20
        $region19: #{tpu_custom_call.1} parent=11 // pred_region
          _
        $region20: #{tpu_custom_call.1} parent=11 // pred_fallthru
          _
        // Predicated region
        $region21: #{tpu_custom_call.1} parent=11 // pred_check
          %p204 = pneg %p129
        $region22: #{tpu_custom_call.1} parent=11 // pred_check_branch
          %206 = sbr.rel (%p204) target = $region24
        $region23: #{tpu_custom_call.1} parent=11 // pred_region
          _
        $region24: #{tpu_custom_call.1} parent=11 // pred_fallthru
          _
        // Predicated region
        $region25: #{tpu_custom_call.1} parent=11 // pred_check
          %p207 = pneg %p150
        $region26: #{tpu_custom_call.1} parent=11 // pred_check_branch
          %209 = sbr.rel (%p207) target = $region28
        $region27: #{tpu_custom_call.1} parent=11 // pred_region
          _
        $region28: #{tpu_custom_call.1} parent=11 // pred_fallthru
          _
      $region12: #{tpu_custom_call.1} parent=5 // pred_fallthru
        _
      %p210 = scmp.lt.s32.totalorder %s14, 2
      // Predicated region
      $region29: #{tpu_custom_call.1} parent=5 // pred_check
        %p211 = pneg %p210
      $region30: #{tpu_custom_call.1} parent=5 // pred_check_branch
        %213 = sbr.rel (%p211) target = $region32
      $region31: #{tpu_custom_call.1} parent=5 // pred_region
        // Predicated region
        $region33: #{tpu_custom_call.1} parent=31 // pred_check
          %p214 = pneg %p55
        $region34: #{tpu_custom_call.1} parent=31 // pred_check_branch
          %216 = sbr.rel (%p214) target = $region36
        $region35: #{tpu_custom_call.1} parent=31 // pred_region
          %p217 = scmp.lt.s32.totalorder %s21, 1
          %s218 = scalar_select %p217, %s21, 1
          %p219 = scmp.lt.s32.totalorder %s23, 0
          %s220 = scalar_select %p219, %s23, 0
          %s221 = smul.addr %s218, 54
          %s222 = sadd.s32 %s220, %s221
          %s223 = smul.addr %s222, 4
          %s224 = scalar_lea.vmem %s0, %s223
        $region36: #{tpu_custom_call.1} parent=31 // pred_fallthru
          _
      $region32: #{tpu_custom_call.1} parent=5 // pred_fallthru
        _
      %p225 = scmp.le.s32.totalorder 1, %s14
      %p226 = scmp.lt.s32.totalorder %s14, 3
      %p227 = pnand %p225, %p226
      %p228 = pneg %p227
      // Predicated region
      $region37: #{tpu_custom_call.1} parent=5 // pred_check
        _
      $region38: #{tpu_custom_call.1} parent=5 // pred_check_branch
        %230 = sbr.rel (%p227) target = $region40
      $region39: #{tpu_custom_call.1} parent=5 // pred_region
        %s231 = ssub.s32 %s14, 1
        %p232 = scmp.lt.s32.totalorder %s24, 1
        %s233 = scalar_select %p232, %s24, 1
        %p234 = scmp.lt.s32.totalorder %s26, 0
        %s235 = scalar_select %p234, %s26, 0
        %s236 = smul.addr %s233, 54
        %s237 = sadd.s32 %s235, %s236
        %s238 = smul.addr %s237, 4
        %s239 = scalar_lea.vmem %s0, %s238
        %p240 = pneg %p61
        %p241 = pneg %p58
        %p242 = scmp.lt.s32.totalorder %s26, 0
        %s243 = scalar_select %p242, %s26, 0
        %s244 = smul.addr %s243, 9
        %s245 = smul.addr %s244, 4
        %s246 = scalar_lea.vmem %s1, %s245
        %p247 = pneg %p87
        %p248 = pneg %p84
        %p249 = pneg %p108
        %p250 = pneg %p105
        %p251 = pneg %p129
        %p252 = pneg %p126
        %p253 = pneg %p150
        %p254 = pneg %p147
        %p255 = pneg %p178
        %p256 = pneg %p175
        %s257 = sand.u32 %s165, 1
        %s258 = scalar_lea.sflag [#allocation3], %s257
        %s259 = sand.u32 %s165, 1
        %s260 = smul.addr %s259, 256
        %s261 = scalar_lea.vmem [#allocation2], %s260
        %p262 = scmp.lt.s32.totalorder %s24, 1
        %s263 = scalar_select %p262, %s24, 1
        %p264 = scmp.lt.s32.totalorder %s26, 0
        %s265 = scalar_select %p264, %s26, 0
        %s266 = smul.addr %s263, 54
        %s267 = sadd.s32 %s265, %s266
        %s268 = smul.addr %s267, 4
        %s269 = scalar_lea.vmem %s0, %s268
        %p270 = scmp.lt.s32.totalorder %s26, 0
        %s271 = scalar_select %p270, %s26, 0
        %s272 = smul.addr %s271, 9
        %s273 = smul.addr %s272, 4
        %s274 = scalar_lea.vmem %s1, %s273
        %s275 = smul.u32 16, %s25
        %s277 = smul.u32 %s25, 16
        %s278 = smul.u32 %s277, 3
        %s279 = smul.addr %s278, 4
        %s280 = scalar_lea.vmem %s269, %s279
        %v281 = vld [vmem:[%s280] sm:$0xf]
        %v282 = vld [vmem:[%s280 + $0x4] sm:$0xf]
        %v283 = vld [vmem:[%s280 + $0x8] sm:$0x1]
        %v284 = vld [vmem:[%s280 + $0xc] sm:$0xf]
        %v285 = vld [vmem:[%s280 + $0x10] sm:$0xf]
        %v286 = vld [vmem:[%s280 + $0x14] sm:$0x1]
        %v287 = vld [vmem:[%s280 + $0x18] sm:$0xf]
        %v288 = vld [vmem:[%s280 + $0x1c] sm:$0xf]
        %v289 = vld [vmem:[%s280 + $0x20] sm:$0x1]
        %v290 = vld [vmem:[%s280 + $0x24] sm:$0xf]
        %v291 = vld [vmem:[%s280 + $0x28] sm:$0xf]
        %v292 = vld [vmem:[%s280 + $0x2c] sm:$0x1]
        %v293 = vld [vmem:[%s280 + $0x30] sm:$0xf]
        %v294 = vld [vmem:[%s280 + $0x34] sm:$0xf]
        %v295 = vld [vmem:[%s280 + $0x38] sm:$0x1]
        %v296 = vld [vmem:[%s280 + $0x3c] sm:$0xf]
        %v297 = vld [vmem:[%s280 + $0x40] sm:$0xf]
        %v298 = vld [vmem:[%s280 + $0x44] sm:$0x1]
        %v299 = vld [vmem:[%s280 + $0x48] sm:$0xf]
        %v300 = vld [vmem:[%s280 + $0x4c] sm:$0xf]
        %v301 = vld [vmem:[%s280 + $0x50] sm:$0x1]
        %v302 = vld [vmem:[%s280 + $0x54] sm:$0xf]
        %v303 = vld [vmem:[%s280 + $0x58] sm:$0xf]
        %v304 = vld [vmem:[%s280 + $0x5c] sm:$0x1]
        %v305 = vld [vmem:[%s280 + $0x60] sm:$0xf]
        %v306 = vld [vmem:[%s280 + $0x64] sm:$0xf]
        %v307 = vld [vmem:[%s280 + $0x68] sm:$0x1]
        %v308 = vld [vmem:[%s280 + $0x6c] sm:$0xf]
        %v309 = vld [vmem:[%s280 + $0x70] sm:$0xf]
        %v310 = vld [vmem:[%s280 + $0x74] sm:$0x1]
        %v311 = vld [vmem:[%s280 + $0x78] sm:$0xf]
        %v312 = vld [vmem:[%s280 + $0x7c] sm:$0xf]
        %v313 = vld [vmem:[%s280 + $0x80] sm:$0x1]
        %v314 = vld [vmem:[%s280 + $0x84] sm:$0xf]
        %v315 = vld [vmem:[%s280 + $0x88] sm:$0xf]
        %v316 = vld [vmem:[%s280 + $0x8c] sm:$0x1]
        %v317 = vld [vmem:[%s280 + $0x90] sm:$0xf]
        %v318 = vld [vmem:[%s280 + $0x94] sm:$0xf]
        %v319 = vld [vmem:[%s280 + $0x98] sm:$0x1]
        %v320 = vld [vmem:[%s280 + $0x9c] sm:$0xf]
        %v321 = vld [vmem:[%s280 + $0xa0] sm:$0xf]
        %v322 = vld [vmem:[%s280 + $0xa4] sm:$0x1]
        %v323 = vld [vmem:[%s280 + $0xa8] sm:$0xf]
        %v324 = vld [vmem:[%s280 + $0xac] sm:$0xf]
        %v325 = vld [vmem:[%s280 + $0xb0] sm:$0x1]
        %v326 = vld [vmem:[%s280 + $0xb4] sm:$0xf]
        %v327 = vld [vmem:[%s280 + $0xb8] sm:$0xf]
        %v328 = vld [vmem:[%s280 + $0xbc] sm:$0x1]
        %v329 = vld [vmem:[%s280 + $0xc0] sm:$0xf]
        %v330 = vld [vmem:[%s280 + $0xc4] sm:$0xf]
        %v331 = vld [vmem:[%s280 + $0xc8] sm:$0x1]
        %v332 = vld [vmem:[%s280 + $0xcc] sm:$0xf]
        %v333 = vld [vmem:[%s280 + $0xd0] sm:$0xf]
        %v334 = vld [vmem:[%s280 + $0xd4] sm:$0x1]
        %v371 = vunpack.c.l.b16 %v281
        %v372 = vunpack.c.l.b16 %v282
        %v373 = vunpack.c.l.b16 %v284
        %v374 = vunpack.c.l.b16 %v285
        %v375 = vunpack.c.l.b16 %v287
        %v376 = vunpack.c.l.b16 %v288
        %v377 = vunpack.c.l.b16 %v290
        %v378 = vunpack.c.l.b16 %v291
        %v379 = vunpack.c.l.b16 %v293
        %v380 = vunpack.c.l.b16 %v294
        %v381 = vunpack.c.l.b16 %v296
        %v382 = vunpack.c.l.b16 %v297
        %v383 = vunpack.c.l.b16 %v299
        %v384 = vunpack.c.l.b16 %v300
        %v385 = vunpack.c.l.b16 %v302
        %v386 = vunpack.c.l.b16 %v303
        %v387 = vunpack.c.l.b16 %v305
        %v388 = vunpack.c.l.b16 %v306
        %v389 = vunpack.c.l.b16 %v308
        %v390 = vunpack.c.l.b16 %v309
        %v391 = vunpack.c.l.b16 %v311
        %v392 = vunpack.c.l.b16 %v312
        %v393 = vunpack.c.l.b16 %v314
        %v394 = vunpack.c.l.b16 %v315
        %v395 = vunpack.c.l.b16 %v317
        %v396 = vunpack.c.l.b16 %v318
        %v397 = vunpack.c.l.b16 %v320
        %v398 = vunpack.c.l.b16 %v321
        %v399 = vunpack.c.l.b16 %v323
        %v400 = vunpack.c.l.b16 %v324
        %v401 = vunpack.c.l.b16 %v326
        %v402 = vunpack.c.l.b16 %v327
        %v403 = vunpack.c.l.b16 %v329
        %v404 = vunpack.c.l.b16 %v330
        %v405 = vunpack.c.l.b16 %v332
        %v406 = vunpack.c.l.b16 %v333
        %v407 = vpack.c.b16 %v372, %v371
        %v408 = vpack.c.b16 %v374, %v373
        %v409 = vpack.c.b16 %v376, %v375
        %v410 = vpack.c.b16 %v378, %v377
        %v411 = vpack.c.b16 %v380, %v379
        %v412 = vpack.c.b16 %v382, %v381
        %v413 = vpack.c.b16 %v384, %v383
        %v414 = vpack.c.b16 %v386, %v385
        %v415 = vpack.c.b16 %v388, %v387
        %v416 = vpack.c.b16 %v390, %v389
        %v417 = vpack.c.b16 %v392, %v391
        %v418 = vpack.c.b16 %v394, %v393
        %v419 = vpack.c.b16 %v396, %v395
        %v420 = vpack.c.b16 %v398, %v397
        %v421 = vpack.c.b16 %v400, %v399
        %v422 = vpack.c.b16 %v402, %v401
        %v423 = vpack.c.b16 %v404, %v403
        %v424 = vpack.c.b16 %v406, %v405
        %v443 = vunpack.c.l.b16 %v283
        %v444 = vunpack.c.l.b16 %v286
        %v445 = vunpack.c.l.b16 %v289
        %v446 = vunpack.c.l.b16 %v292
        %v447 = vunpack.c.l.b16 %v295
        %v448 = vunpack.c.l.b16 %v298
        %v449 = vunpack.c.l.b16 %v301
        %v450 = vunpack.c.l.b16 %v304
        %v451 = vunpack.c.l.b16 %v307
        %v452 = vunpack.c.l.b16 %v310
        %v453 = vunpack.c.l.b16 %v313
        %v454 = vunpack.c.l.b16 %v316
        %v455 = vunpack.c.l.b16 %v319
        %v456 = vunpack.c.l.b16 %v322
        %v457 = vunpack.c.l.b16 %v325
        %v458 = vunpack.c.l.b16 %v328
        %v459 = vunpack.c.l.b16 %v331
        %v460 = vunpack.c.l.b16 %v334
        %v461 = vpack.c.b16 %v443, %v443
        %v462 = vpack.c.b16 %v444, %v444
        %v463 = vpack.c.b16 %v445, %v445
        %v464 = vpack.c.b16 %v446, %v446
        %v465 = vpack.c.b16 %v447, %v447
        %v466 = vpack.c.b16 %v448, %v448
        %v467 = vpack.c.b16 %v449, %v449
        %v468 = vpack.c.b16 %v450, %v450
        %v469 = vpack.c.b16 %v451, %v451
        %v470 = vpack.c.b16 %v452, %v452
        %v471 = vpack.c.b16 %v453, %v453
        %v472 = vpack.c.b16 %v454, %v454
        %v473 = vpack.c.b16 %v455, %v455
        %v474 = vpack.c.b16 %v456, %v456
        %v475 = vpack.c.b16 %v457, %v457
        %v476 = vpack.c.b16 %v458, %v458
        %v477 = vpack.c.b16 %v459, %v459
        %v478 = vpack.c.b16 %v460, %v460
        %vm479 = vsmask.f32 7424
        %v481 = vshrl.u32 %v407, 16
        %v483 = vshll.u32 %v407, 16
        %v485 = vrot.slane %v483, 1
        %v486 = vor.u32 %v481, %v485
        %v488 = vshll.u32 %v461, 16
        %v490 = vrot.slane %v488, 1
        %v491 = vsel %vm479, %v486, %v490
        %v493 = vshrl.u32 %v408, 16
        %v495 = vshll.u32 %v408, 16
        %v497 = vrot.slane %v495, 1
        %v498 = vor.u32 %v493, %v497
        %v500 = vshll.u32 %v462, 16
        %v502 = vrot.slane %v500, 1
        %v503 = vsel %vm479, %v498, %v502
        %v505 = vshrl.u32 %v409, 16
        %v507 = vshll.u32 %v409, 16
        %v509 = vrot.slane %v507, 1
        %v510 = vor.u32 %v505, %v509
        %v512 = vshll.u32 %v463, 16
        %v514 = vrot.slane %v512, 1
        %v515 = vsel %vm479, %v510, %v514
        %v517 = vshrl.u32 %v410, 16
        %v519 = vshll.u32 %v410, 16
        %v521 = vrot.slane %v519, 1
        %v522 = vor.u32 %v517, %v521
        %v524 = vshll.u32 %v464, 16
        %v526 = vrot.slane %v524, 1
        %v527 = vsel %vm479, %v522, %v526
        %v529 = vshrl.u32 %v411, 16
        %v531 = vshll.u32 %v411, 16
        %v533 = vrot.slane %v531, 1
        %v534 = vor.u32 %v529, %v533
        %v536 = vshll.u32 %v465, 16
        %v538 = vrot.slane %v536, 1
        %v539 = vsel %vm479, %v534, %v538
        %v541 = vshrl.u32 %v412, 16
        %v543 = vshll.u32 %v412, 16
        %v545 = vrot.slane %v543, 1
        %v546 = vor.u32 %v541, %v545
        %v548 = vshll.u32 %v466, 16
        %v550 = vrot.slane %v548, 1
        %v551 = vsel %vm479, %v546, %v550
        %v553 = vshrl.u32 %v413, 16
        %v555 = vshll.u32 %v413, 16
        %v557 = vrot.slane %v555, 1
        %v558 = vor.u32 %v553, %v557
        %v560 = vshll.u32 %v467, 16
        %v562 = vrot.slane %v560, 1
        %v563 = vsel %vm479, %v558, %v562
        %v565 = vshrl.u32 %v414, 16
        %v567 = vshll.u32 %v414, 16
        %v569 = vrot.slane %v567, 1
        %v570 = vor.u32 %v565, %v569
        %v572 = vshll.u32 %v468, 16
        %v574 = vrot.slane %v572, 1
        %v575 = vsel %vm479, %v570, %v574
        %v577 = vshrl.u32 %v415, 16
        %v579 = vshll.u32 %v415, 16
        %v581 = vrot.slane %v579, 1
        %v582 = vor.u32 %v577, %v581
        %v584 = vshll.u32 %v469, 16
        %v586 = vrot.slane %v584, 1
        %v587 = vsel %vm479, %v582, %v586
        %v589 = vshrl.u32 %v416, 16
        %v591 = vshll.u32 %v416, 16
        %v593 = vrot.slane %v591, 1
        %v594 = vor.u32 %v589, %v593
        %v596 = vshll.u32 %v470, 16
        %v598 = vrot.slane %v596, 1
        %v599 = vsel %vm479, %v594, %v598
        %v601 = vshrl.u32 %v417, 16
        %v603 = vshll.u32 %v417, 16
        %v605 = vrot.slane %v603, 1
        %v606 = vor.u32 %v601, %v605
        %v608 = vshll.u32 %v471, 16
        %v610 = vrot.slane %v608, 1
        %v611 = vsel %vm479, %v606, %v610
        %v613 = vshrl.u32 %v418, 16
        %v615 = vshll.u32 %v418, 16
        %v617 = vrot.slane %v615, 1
        %v618 = vor.u32 %v613, %v617
        %v620 = vshll.u32 %v472, 16
        %v622 = vrot.slane %v620, 1
        %v623 = vsel %vm479, %v618, %v622
        %v625 = vshrl.u32 %v419, 16
        %v627 = vshll.u32 %v419, 16
        %v629 = vrot.slane %v627, 1
        %v630 = vor.u32 %v625, %v629
        %v632 = vshll.u32 %v473, 16
        %v634 = vrot.slane %v632, 1
        %v635 = vsel %vm479, %v630, %v634
        %v637 = vshrl.u32 %v420, 16
        %v639 = vshll.u32 %v420, 16
        %v641 = vrot.slane %v639, 1
        %v642 = vor.u32 %v637, %v641
        %v644 = vshll.u32 %v474, 16
        %v646 = vrot.slane %v644, 1
        %v647 = vsel %vm479, %v642, %v646
        %v649 = vshrl.u32 %v421, 16
        %v651 = vshll.u32 %v421, 16
        %v653 = vrot.slane %v651, 1
        %v654 = vor.u32 %v649, %v653
        %v656 = vshll.u32 %v475, 16
        %v658 = vrot.slane %v656, 1
        %v659 = vsel %vm479, %v654, %v658
        %v661 = vshrl.u32 %v422, 16
        %v663 = vshll.u32 %v422, 16
        %v665 = vrot.slane %v663, 1
        %v666 = vor.u32 %v661, %v665
        %v668 = vshll.u32 %v476, 16
        %v670 = vrot.slane %v668, 1
        %v671 = vsel %vm479, %v666, %v670
        %v673 = vshrl.u32 %v423, 16
        %v675 = vshll.u32 %v423, 16
        %v677 = vrot.slane %v675, 1
        %v678 = vor.u32 %v673, %v677
        %v680 = vshll.u32 %v477, 16
        %v682 = vrot.slane %v680, 1
        %v683 = vsel %vm479, %v678, %v682
        %v685 = vshrl.u32 %v424, 16
        %v687 = vshll.u32 %v424, 16
        %v689 = vrot.slane %v687, 1
        %v690 = vor.u32 %v685, %v689
        %v692 = vshll.u32 %v478, 16
        %v694 = vrot.slane %v692, 1
        %v695 = vsel %vm479, %v690, %v694
        %696 = vrot.lane.b32.xlu0 %v491, 8
        %v697 = vpop.permute.xlu0 %696
        %698 = vrot.lane.b32.xlu0 %v503, 8
        %v699 = vpop.permute.xlu0 %698
        %700 = vrot.lane.b32.xlu0 %v515, 8
        %v701 = vpop.permute.xlu0 %700
        %702 = vrot.lane.b32.xlu0 %v527, 8
        %v703 = vpop.permute.xlu0 %702
        %704 = vrot.lane.b32.xlu0 %v539, 8
        %v705 = vpop.permute.xlu0 %704
        %706 = vrot.lane.b32.xlu0 %v551, 8
        %v707 = vpop.permute.xlu0 %706
        %708 = vrot.lane.b32.xlu0 %v563, 8
        %v709 = vpop.permute.xlu0 %708
        %710 = vrot.lane.b32.xlu0 %v575, 8
        %v711 = vpop.permute.xlu0 %710
        %712 = vrot.lane.b32.xlu0 %v587, 8
        %v713 = vpop.permute.xlu0 %712
        %714 = vrot.lane.b32.xlu0 %v599, 8
        %v715 = vpop.permute.xlu0 %714
        %716 = vrot.lane.b32.xlu0 %v611, 8
        %v717 = vpop.permute.xlu0 %716
        %718 = vrot.lane.b32.xlu0 %v623, 8
        %v719 = vpop.permute.xlu0 %718
        %720 = vrot.lane.b32.xlu0 %v635, 8
        %v721 = vpop.permute.xlu0 %720
        %722 = vrot.lane.b32.xlu0 %v647, 8
        %v723 = vpop.permute.xlu0 %722
        %724 = vrot.lane.b32.xlu0 %v659, 8
        %v725 = vpop.permute.xlu0 %724
        %726 = vrot.lane.b32.xlu0 %v671, 8
        %v727 = vpop.permute.xlu0 %726
        %728 = vrot.lane.b32.xlu0 %v683, 8
        %v729 = vpop.permute.xlu0 %728
        %730 = vrot.lane.b32.xlu0 %v695, 8
        %v731 = vpop.permute.xlu0 %730
        %vm732 = vcmask 1046528
        %v733 = vrot.slane %v407, 1
        %v734 = vrot.slane %v461, 1
        %v735 = vsel %vm732, %v733, %v734
        %v736 = vrot.slane %v408, 1
        %v737 = vrot.slane %v462, 1
        %v738 = vsel %vm732, %v736, %v737
        %v739 = vrot.slane %v409, 1
        %v740 = vrot.slane %v463, 1
        %v741 = vsel %vm732, %v739, %v740
        %v742 = vrot.slane %v410, 1
        %v743 = vrot.slane %v464, 1
        %v744 = vsel %vm732, %v742, %v743
        %v745 = vrot.slane %v411, 1
        %v746 = vrot.slane %v465, 1
        %v747 = vsel %vm732, %v745, %v746
        %v748 = vrot.slane %v412, 1
        %v749 = vrot.slane %v466, 1
        %v750 = vsel %vm732, %v748, %v749
        %v751 = vrot.slane %v413, 1
        %v752 = vrot.slane %v467, 1
        %v753 = vsel %vm732, %v751, %v752
        %v754 = vrot.slane %v414, 1
        %v755 = vrot.slane %v468, 1
        %v756 = vsel %vm732, %v754, %v755
        %v757 = vrot.slane %v415, 1
        %v758 = vrot.slane %v469, 1
        %v759 = vsel %vm732, %v757, %v758
        %v760 = vrot.slane %v416, 1
        %v761 = vrot.slane %v470, 1
        %v762 = vsel %vm732, %v760, %v761
        %v763 = vrot.slane %v417, 1
        %v764 = vrot.slane %v471, 1
        %v765 = vsel %vm732, %v763, %v764
        %v766 = vrot.slane %v418, 1
        %v767 = vrot.slane %v472, 1
        %v768 = vsel %vm732, %v766, %v767
        %v769 = vrot.slane %v419, 1
        %v770 = vrot.slane %v473, 1
        %v771 = vsel %vm732, %v769, %v770
        %v772 = vrot.slane %v420, 1
        %v773 = vrot.slane %v474, 1
        %v774 = vsel %vm732, %v772, %v773
        %v775 = vrot.slane %v421, 1
        %v776 = vrot.slane %v475, 1
        %v777 = vsel %vm732, %v775, %v776
        %v778 = vrot.slane %v422, 1
        %v779 = vrot.slane %v476, 1
        %v780 = vsel %vm732, %v778, %v779
        %v781 = vrot.slane %v423, 1
        %v782 = vrot.slane %v477, 1
        %v783 = vsel %vm732, %v781, %v782
        %v784 = vrot.slane %v424, 1
        %v785 = vrot.slane %v478, 1
        %v786 = vsel %vm732, %v784, %v785
        %787 = vrot.lane.b32.xlu0 %v735, 16
        %v788 = vpop.permute.xlu0 %787
        %789 = vrot.lane.b32.xlu0 %v738, 16
        %v790 = vpop.permute.xlu0 %789
        %791 = vrot.lane.b32.xlu0 %v741, 16
        %v792 = vpop.permute.xlu0 %791
        %793 = vrot.lane.b32.xlu0 %v744, 16
        %v794 = vpop.permute.xlu0 %793
        %795 = vrot.lane.b32.xlu0 %v747, 16
        %v796 = vpop.permute.xlu0 %795
        %797 = vrot.lane.b32.xlu0 %v750, 16
        %v798 = vpop.permute.xlu0 %797
        %799 = vrot.lane.b32.xlu0 %v753, 16
        %v800 = vpop.permute.xlu0 %799
        %801 = vrot.lane.b32.xlu0 %v756, 16
        %v802 = vpop.permute.xlu0 %801
        %803 = vrot.lane.b32.xlu0 %v759, 16
        %v804 = vpop.permute.xlu0 %803
        %805 = vrot.lane.b32.xlu0 %v762, 16
        %v806 = vpop.permute.xlu0 %805
        %807 = vrot.lane.b32.xlu0 %v765, 16
        %v808 = vpop.permute.xlu0 %807
        %809 = vrot.lane.b32.xlu0 %v768, 16
        %v810 = vpop.permute.xlu0 %809
        %811 = vrot.lane.b32.xlu0 %v771, 16
        %v812 = vpop.permute.xlu0 %811
        %813 = vrot.lane.b32.xlu0 %v774, 16
        %v814 = vpop.permute.xlu0 %813
        %815 = vrot.lane.b32.xlu0 %v777, 16
        %v816 = vpop.permute.xlu0 %815
        %817 = vrot.lane.b32.xlu0 %v780, 16
        %v818 = vpop.permute.xlu0 %817
        %819 = vrot.lane.b32.xlu0 %v783, 16
        %v820 = vpop.permute.xlu0 %819
        %821 = vrot.lane.b32.xlu0 %v786, 16
        %v822 = vpop.permute.xlu0 %821
        %vm823 = vcmask 64512
        %v825 = vsel %vm823, %v407, %v697
        %v827 = vsel %vm823, %v408, %v699
        %v829 = vsel %vm823, %v409, %v701
        %v831 = vsel %vm823, %v410, %v703
        %v833 = vsel %vm823, %v411, %v705
        %v835 = vsel %vm823, %v412, %v707
        %v837 = vsel %vm823, %v413, %v709
        %v839 = vsel %vm823, %v414, %v711
        %v841 = vsel %vm823, %v415, %v713
        %v843 = vsel %vm823, %v416, %v715
        %v845 = vsel %vm823, %v417, %v717
        %v847 = vsel %vm823, %v418, %v719
        %v849 = vsel %vm823, %v419, %v721
        %v851 = vsel %vm823, %v420, %v723
        %v853 = vsel %vm823, %v421, %v725
        %v855 = vsel %vm823, %v422, %v727
        %v857 = vsel %vm823, %v423, %v729
        %v859 = vsel %vm823, %v424, %v731
        %vm860 = vcmask 130048
        %v862 = vsel %vm860, %v825, %v788
        %v864 = vsel %vm860, %v827, %v790
        %v866 = vsel %vm860, %v829, %v792
        %v868 = vsel %vm860, %v831, %v794
        %v870 = vsel %vm860, %v833, %v796
        %v872 = vsel %vm860, %v835, %v798
        %v874 = vsel %vm860, %v837, %v800
        %v876 = vsel %vm860, %v839, %v802
        %v878 = vsel %vm860, %v841, %v804
        %v880 = vsel %vm860, %v843, %v806
        %v882 = vsel %vm860, %v845, %v808
        %v884 = vsel %vm860, %v847, %v810
        %v886 = vsel %vm860, %v849, %v812
        %v888 = vsel %vm860, %v851, %v814
        %v890 = vsel %vm860, %v853, %v816
        %v892 = vsel %vm860, %v855, %v818
        %v894 = vsel %vm860, %v857, %v820
        %v896 = vsel %vm860, %v859, %v822
        %v897 = vld [vmem:[%s274] sm:$0xf]
        %v898 = vld [vmem:[%s274 + $0x4] sm:$0xf]
        %v899 = vld [vmem:[%s274 + $0x8] sm:$0xf]
        %s900 = scalar_lea.vmem %s274, 12
        %v901 = vld [vmem:[%s900] sm:$0xf]
        %v902 = vld [vmem:[%s900 + $0x4] sm:$0xf]
        %v903 = vld [vmem:[%s900 + $0x8] sm:$0xf]
        %v907 = vunpack.c.l.b16 %v901
        %v908 = vunpack.c.l.b16 %v902
        %v909 = vunpack.c.l.b16 %v903
        %v910 = vpack.c.b16 %v908, %v907
        %v911 = vpack.c.b16 %v909, %v909
        %vm913 = vcmask 195584
        %v914 = vsel %vm913, %v864, 0
        %v916 = vsel %vm913, %v866, 0
        %v918 = vsel %vm913, %v868, 0
        %v920 = vsel %vm913, %v870, 0
        %v922 = vsel %vm913, %v872, 0
        %v924 = vsel %vm913, %v874, 0
        %v926 = vsel %vm913, %v876, 0
        %v928 = vsel %vm913, %v878, 0
        %v930 = vsel %vm913, %v880, 0
        %v932 = vsel %vm913, %v882, 0
        %v934 = vsel %vm913, %v884, 0
        %v936 = vsel %vm913, %v886, 0
        %v938 = vsel %vm913, %v888, 0
        %v940 = vsel %vm913, %v890, 0
        %v942 = vsel %vm913, %v892, 0
        %v944 = vsel %vm913, %v894, 0
        %vm946 = vcmask 1043456
        %v948 = vsel %vm946, %v911, 0
        %950 = vmatprep.subr.bf16.mxu0 0
        %951 = vmatpush1.bf16.msra.mxu0 %v910
        %952 = vmatprep.subr.bf16.mxu0 0
        %953 = vmatpush1.bf16.msra.mxu0 %v948
        %954 = vmatprep.subr.bf16.mxu0 0
        %955 = vmatpush1.bf16.msra.mxu0 0
        %956 = vmatprep.subr.bf16.mxu0 0
        %957 = vmatpush1.bf16.msra.mxu0 0
        %958 = vmatprep.subr.bf16.mxu0 0
        %959 = vmatpush1.bf16.msra.mxu0 0
        %960 = vmatprep.subr.bf16.mxu0 0
        %961 = vmatpush1.bf16.msra.mxu0 0
        %962 = vmatprep.subr.bf16.mxu0 0
        %963 = vmatpush1.bf16.msra.mxu0 0
        %964 = vmatprep.subr.bf16.mxu0 0
        %965 = vmatpush1.bf16.msra.mxu0 0
        %966 = vmatprep.subr.bf16.mxu0 0
        %967 = vmatpush1.bf16.msra.mxu0 0
        %968 = vmatprep.subr.bf16.mxu0 0
        %969 = vmatpush1.bf16.msra.mxu0 0
        %970 = vmatprep.subr.bf16.mxu0 0
        %971 = vmatpush1.bf16.msra.mxu0 0
        %972 = vmatprep.subr.bf16.mxu0 0
        %973 = vmatpush1.bf16.msra.mxu0 0
        %974 = vmatprep.subr.bf16.mxu0 0
        %975 = vmatpush1.bf16.msra.mxu0 0
        %976 = vmatprep.subr.bf16.mxu0 0
        %977 = vmatpush1.bf16.msra.mxu0 0
        %978 = vmatprep.subr.bf16.mxu0 0
        %979 = vmatpush1.bf16.msra.mxu0 0
        %980 = vmatprep.subr.bf16.mxu0 0
        %981 = vmatpush1.bf16.msra.mxu0 0
        %982 = vmatprep.mubr.bf16.mxu0 0
        %983 = vmatmul.mubr.bf16.gmra.mrb[0].mxu0 %v914
        %v984 = vpop.f32.mrb[0].mxu0
        %v985 = vadd.f32 0.0, %v984
        %v986 = vpop.f32.mrb[0].mxu0
        %v987 = vpop.f32.mrb[0].mxu0
        %v988 = vadd.f32 0.0, %v987
        %v989 = vpop.f32.mrb[0].mxu0
        %990 = vmatprep.mubr.bf16.mxu0 0
        %991 = vmatmul.mubr.bf16.gmra.mrb[0].mxu0 %v916
        %v992 = vpop.f32.mrb[0].mxu0
        %v993 = vadd.f32 0.0, %v992
        %v994 = vpop.f32.mrb[0].mxu0
        %v995 = vpop.f32.mrb[0].mxu0
        %v996 = vadd.f32 0.0, %v995
        %v997 = vpop.f32.mrb[0].mxu0
        %998 = vmatprep.mubr.bf16.mxu0 0
        %999 = vmatmul.mubr.bf16.gmra.mrb[0].mxu0 %v918
        %v1000 = vpop.f32.mrb[0].mxu0
        %v1001 = vadd.f32 0.0, %v1000
        %v1002 = vpop.f32.mrb[0].mxu0
        %v1003 = vpop.f32.mrb[0].mxu0
        %v1004 = vadd.f32 0.0, %v1003
        %v1005 = vpop.f32.mrb[0].mxu0
        %1006 = vmatprep.mubr.bf16.mxu0 0
        %1007 = vmatmul.mubr.bf16.gmra.mrb[0].mxu0 %v920
        %v1008 = vpop.f32.mrb[0].mxu0
        %v1009 = vadd.f32 0.0, %v1008
        %v1010 = vpop.f32.mrb[0].mxu0
        %v1011 = vpop.f32.mrb[0].mxu0
        %v1012 = vadd.f32 0.0, %v1011
        %v1013 = vpop.f32.mrb[0].mxu0
        %1014 = vmatprep.mubr.bf16.mxu0 0
        %1015 = vmatmul.mubr.bf16.gmra.mrb[0].mxu0 %v922
        %v1016 = vpop.f32.mrb[0].mxu0
        %v1017 = vadd.f32 0.0, %v1016
        %v1018 = vpop.f32.mrb[0].mxu0
        %v1019 = vpop.f32.mrb[0].mxu0
        %v1020 = vadd.f32 0.0, %v1019
        %v1021 = vpop.f32.mrb[0].mxu0
        %1022 = vmatprep.mubr.bf16.mxu0 0
        %1023 = vmatmul.mubr.bf16.gmra.mrb[0].mxu0 %v924
        %v1024 = vpop.f32.mrb[0].mxu0
        %v1025 = vadd.f32 0.0, %v1024
        %v1026 = vpop.f32.mrb[0].mxu0
        %v1027 = vpop.f32.mrb[0].mxu0
        %v1028 = vadd.f32 0.0, %v1027
        %v1029 = vpop.f32.mrb[0].mxu0
        %1030 = vmatprep.mubr.bf16.mxu0 0
        %1031 = vmatmul.mubr.bf16.gmra.mrb[0].mxu0 %v926
        %v1032 = vpop.f32.mrb[0].mxu0
        %v1033 = vadd.f32 0.0, %v1032
        %v1034 = vpop.f32.mrb[0].mxu0
        %v1035 = vpop.f32.mrb[0].mxu0
        %v1036 = vadd.f32 0.0, %v1035
        %v1037 = vpop.f32.mrb[0].mxu0
        %1038 = vmatprep.mubr.bf16.mxu0 0
        %1039 = vmatmul.mubr.bf16.gmra.mrb[0].mxu0 %v928
        %v1040 = vpop.f32.mrb[0].mxu0
        %v1041 = vadd.f32 0.0, %v1040
        %v1042 = vpop.f32.mrb[0].mxu0
        %v1043 = vpop.f32.mrb[0].mxu0
        %v1044 = vadd.f32 0.0, %v1043
        %v1045 = vpop.f32.mrb[0].mxu0
        %1046 = vmatprep.mubr.bf16.mxu0 0
        %1047 = vmatmul.mubr.bf16.gmra.mrb[0].mxu0 %v930
        %v1048 = vpop.f32.mrb[0].mxu0
        %v1049 = vadd.f32 0.0, %v1048
        %v1050 = vpop.f32.mrb[0].mxu0
        %v1051 = vpop.f32.mrb[0].mxu0
        %v1052 = vadd.f32 0.0, %v1051
        %v1053 = vpop.f32.mrb[0].mxu0
        %1054 = vmatprep.mubr.bf16.mxu0 0
        %1055 = vmatmul.mubr.bf16.gmra.mrb[0].mxu0 %v932
        %v1056 = vpop.f32.mrb[0].mxu0
        %v1057 = vadd.f32 0.0, %v1056
        %v1058 = vpop.f32.mrb[0].mxu0
        %v1059 = vpop.f32.mrb[0].mxu0
        %v1060 = vadd.f32 0.0, %v1059
        %v1061 = vpop.f32.mrb[0].mxu0
        %1062 = vmatprep.mubr.bf16.mxu0 0
        %1063 = vmatmul.mubr.bf16.gmra.mrb[0].mxu0 %v934
        %v1064 = vpop.f32.mrb[0].mxu0
        %v1065 = vadd.f32 0.0, %v1064
        %v1066 = vpop.f32.mrb[0].mxu0
        %v1067 = vpop.f32.mrb[0].mxu0
        %v1068 = vadd.f32 0.0, %v1067
        %v1069 = vpop.f32.mrb[0].mxu0
        %1070 = vmatprep.mubr.bf16.mxu0 0
        %1071 = vmatmul.mubr.bf16.gmra.mrb[0].mxu0 %v936
        %v1072 = vpop.f32.mrb[0].mxu0
        %v1073 = vadd.f32 0.0, %v1072
        %v1074 = vpop.f32.mrb[0].mxu0
        %v1075 = vpop.f32.mrb[0].mxu0
        %v1076 = vadd.f32 0.0, %v1075
        %v1077 = vpop.f32.mrb[0].mxu0
        %1078 = vmatprep.mubr.bf16.mxu0 0
        %1079 = vmatmul.mubr.bf16.gmra.mrb[0].mxu0 %v938
        %v1080 = vpop.f32.mrb[0].mxu0
        %v1081 = vadd.f32 0.0, %v1080
        %v1082 = vpop.f32.mrb[0].mxu0
        %v1083 = vpop.f32.mrb[0].mxu0
        %v1084 = vadd.f32 0.0, %v1083
        %v1085 = vpop.f32.mrb[0].mxu0
        %1086 = vmatprep.mubr.bf16.mxu0 0
        %1087 = vmatmul.mubr.bf16.gmra.mrb[0].mxu0 %v940
        %v1088 = vpop.f32.mrb[0].mxu0
        %v1089 = vadd.f32 0.0, %v1088
        %v1090 = vpop.f32.mrb[0].mxu0
        %v1091 = vpop.f32.mrb[0].mxu0
        %v1092 = vadd.f32 0.0, %v1091
        %v1093 = vpop.f32.mrb[0].mxu0
        %1094 = vmatprep.mubr.bf16.mxu0 0
        %1095 = vmatmul.mubr.bf16.gmra.mrb[0].mxu0 %v942
        %v1096 = vpop.f32.mrb[0].mxu0
        %v1097 = vadd.f32 0.0, %v1096
        %v1098 = vpop.f32.mrb[0].mxu0
        %v1099 = vpop.f32.mrb[0].mxu0
        %v1100 = vadd.f32 0.0, %v1099
        %v1101 = vpop.f32.mrb[0].mxu0
        %1102 = vmatprep.mubr.bf16.mxu0 0
        %1103 = vmatmul.mubr.bf16.gmra.mrb[0].mxu0 %v944
        %v1104 = vpop.f32.mrb[0].mxu0
        %v1105 = vadd.f32 0.0, %v1104
        %v1106 = vpop.f32.mrb[0].mxu0
        %v1107 = vpop.f32.mrb[0].mxu0
        %v1108 = vadd.f32 0.0, %v1107
        %v1109 = vpop.f32.mrb[0].mxu0
        %1110 = vdwg.mxu0
        %v1114 = vunpack.c.l.b16 %v897
        %v1115 = vunpack.c.l.b16 %v898
        %v1116 = vunpack.c.l.b16 %v899
        %v1117 = vpack.c.b16 %v1115, %v1114
        %v1118 = vpack.c.b16 %v1116, %v1116
        %v1120 = vsel %vm913, %v862, 0
        %v1123 = vsel %vm946, %v1118, 0
        %1125 = vmatprep.subr.bf16.mxu0 0
        %1126 = vmatpush1.bf16.msra.mxu0 %v1117
        %1127 = vmatprep.subr.bf16.mxu0 0
        %1128 = vmatpush1.bf16.msra.mxu0 %v1123
        %1129 = vmatprep.subr.bf16.mxu0 0
        %1130 = vmatpush1.bf16.msra.mxu0 0
        %1131 = vmatprep.subr.bf16.mxu0 0
        %1132 = vmatpush1.bf16.msra.mxu0 0
        %1133 = vmatprep.subr.bf16.mxu0 0
        %1134 = vmatpush1.bf16.msra.mxu0 0
        %1135 = vmatprep.subr.bf16.mxu0 0
        %1136 = vmatpush1.bf16.msra.mxu0 0
        %1137 = vmatprep.subr.bf16.mxu0 0
        %1138 = vmatpush1.bf16.msra.mxu0 0
        %1139 = vmatprep.subr.bf16.mxu0 0
        %1140 = vmatpush1.bf16.msra.mxu0 0
        %1141 = vmatprep.subr.bf16.mxu0 0
        %1142 = vmatpush1.bf16.msra.mxu0 0
        %1143 = vmatprep.subr.bf16.mxu0 0
        %1144 = vmatpush1.bf16.msra.mxu0 0
        %1145 = vmatprep.subr.bf16.mxu0 0
        %1146 = vmatpush1.bf16.msra.mxu0 0
        %1147 = vmatprep.subr.bf16.mxu0 0
        %1148 = vmatpush1.bf16.msra.mxu0 0
        %1149 = vmatprep.subr.bf16.mxu0 0
        %1150 = vmatpush1.bf16.msra.mxu0 0
        %1151 = vmatprep.subr.bf16.mxu0 0
        %1152 = vmatpush1.bf16.msra.mxu0 0
        %1153 = vmatprep.subr.bf16.mxu0 0
        %1154 = vmatpush1.bf16.msra.mxu0 0
        %1155 = vmatprep.subr.bf16.mxu0 0
        %1156 = vmatpush1.bf16.msra.mxu0 0
        %1157 = vmatprep.mubr.bf16.mxu0 0
        %1158 = vmatmul.mubr.bf16.gmra.mrb[0].mxu0 %v1120
        %v1159 = vpop.f32.mrb[0].mxu0
        %v1160 = vadd.f32 %v985, %v1159
        %v1161 = vpop.f32.mrb[0].mxu0
        %v1162 = vpop.f32.mrb[0].mxu0
        %v1163 = vadd.f32 %v988, %v1162
        %v1164 = vpop.f32.mrb[0].mxu0
        %1165 = vmatprep.mubr.bf16.mxu0 0
        %1166 = vmatmul.mubr.bf16.gmra.mrb[0].mxu0 %v914
        %v1167 = vpop.f32.mrb[0].mxu0
        %v1168 = vadd.f32 %v993, %v1167
        %v1169 = vpop.f32.mrb[0].mxu0
        %v1170 = vpop.f32.mrb[0].mxu0
        %v1171 = vadd.f32 %v996, %v1170
        %v1172 = vpop.f32.mrb[0].mxu0
        %1173 = vmatprep.mubr.bf16.mxu0 0
        %1174 = vmatmul.mubr.bf16.gmra.mrb[0].mxu0 %v916
        %v1175 = vpop.f32.mrb[0].mxu0
        %v1176 = vadd.f32 %v1001, %v1175
        %v1177 = vpop.f32.mrb[0].mxu0
        %v1178 = vpop.f32.mrb[0].mxu0
        %v1179 = vadd.f32 %v1004, %v1178
        %v1180 = vpop.f32.mrb[0].mxu0
        %1181 = vmatprep.mubr.bf16.mxu0 0
        %1182 = vmatmul.mubr.bf16.gmra.mrb[0].mxu0 %v918
        %v1183 = vpop.f32.mrb[0].mxu0
        %v1184 = vadd.f32 %v1009, %v1183
        %v1185 = vpop.f32.mrb[0].mxu0
        %v1186 = vpop.f32.mrb[0].mxu0
        %v1187 = vadd.f32 %v1012, %v1186
        %v1188 = vpop.f32.mrb[0].mxu0
        %1189 = vmatprep.mubr.bf16.mxu0 0
        %1190 = vmatmul.mubr.bf16.gmra.mrb[0].mxu0 %v920
        %v1191 = vpop.f32.mrb[0].mxu0
        %v1192 = vadd.f32 %v1017, %v1191
        %v1193 = vpop.f32.mrb[0].mxu0
        %v1194 = vpop.f32.mrb[0].mxu0
        %v1195 = vadd.f32 %v1020, %v1194
        %v1196 = vpop.f32.mrb[0].mxu0
        %1197 = vmatprep.mubr.bf16.mxu0 0
        %1198 = vmatmul.mubr.bf16.gmra.mrb[0].mxu0 %v922
        %v1199 = vpop.f32.mrb[0].mxu0
        %v1200 = vadd.f32 %v1025, %v1199
        %v1201 = vpop.f32.mrb[0].mxu0
        %v1202 = vpop.f32.mrb[0].mxu0
        %v1203 = vadd.f32 %v1028, %v1202
        %v1204 = vpop.f32.mrb[0].mxu0
        %1205 = vmatprep.mubr.bf16.mxu0 0
        %1206 = vmatmul.mubr.bf16.gmra.mrb[0].mxu0 %v924
        %v1207 = vpop.f32.mrb[0].mxu0
        %v1208 = vadd.f32 %v1033, %v1207
        %v1209 = vpop.f32.mrb[0].mxu0
        %v1210 = vpop.f32.mrb[0].mxu0
        %v1211 = vadd.f32 %v1036, %v1210
        %v1212 = vpop.f32.mrb[0].mxu0
        %1213 = vmatprep.mubr.bf16.mxu0 0
        %1214 = vmatmul.mubr.bf16.gmra.mrb[0].mxu0 %v926
        %v1215 = vpop.f32.mrb[0].mxu0
        %v1216 = vadd.f32 %v1041, %v1215
        %v1217 = vpop.f32.mrb[0].mxu0
        %v1218 = vpop.f32.mrb[0].mxu0
        %v1219 = vadd.f32 %v1044, %v1218
        %v1220 = vpop.f32.mrb[0].mxu0
        %1221 = vmatprep.mubr.bf16.mxu0 0
        %1222 = vmatmul.mubr.bf16.gmra.mrb[0].mxu0 %v928
        %v1223 = vpop.f32.mrb[0].mxu0
        %v1224 = vadd.f32 %v1049, %v1223
        %v1225 = vpop.f32.mrb[0].mxu0
        %v1226 = vpop.f32.mrb[0].mxu0
        %v1227 = vadd.f32 %v1052, %v1226
        %v1228 = vpop.f32.mrb[0].mxu0
        %1229 = vmatprep.mubr.bf16.mxu0 0
        %1230 = vmatmul.mubr.bf16.gmra.mrb[0].mxu0 %v930
        %v1231 = vpop.f32.mrb[0].mxu0
        %v1232 = vadd.f32 %v1057, %v1231
        %v1233 = vpop.f32.mrb[0].mxu0
        %v1234 = vpop.f32.mrb[0].mxu0
        %v1235 = vadd.f32 %v1060, %v1234
        %v1236 = vpop.f32.mrb[0].mxu0
        %1237 = vmatprep.mubr.bf16.mxu0 0
        %1238 = vmatmul.mubr.bf16.gmra.mrb[0].mxu0 %v932
        %v1239 = vpop.f32.mrb[0].mxu0
        %v1240 = vadd.f32 %v1065, %v1239
        %v1241 = vpop.f32.mrb[0].mxu0
        %v1242 = vpop.f32.mrb[0].mxu0
        %v1243 = vadd.f32 %v1068, %v1242
        %v1244 = vpop.f32.mrb[0].mxu0
        %1245 = vmatprep.mubr.bf16.mxu0 0
        %1246 = vmatmul.mubr.bf16.gmra.mrb[0].mxu0 %v934
        %v1247 = vpop.f32.mrb[0].mxu0
        %v1248 = vadd.f32 %v1073, %v1247
        %v1249 = vpop.f32.mrb[0].mxu0
        %v1250 = vpop.f32.mrb[0].mxu0
        %v1251 = vadd.f32 %v1076, %v1250
        %v1252 = vpop.f32.mrb[0].mxu0
        %1253 = vmatprep.mubr.bf16.mxu0 0
        %1254 = vmatmul.mubr.bf16.gmra.mrb[0].mxu0 %v936
        %v1255 = vpop.f32.mrb[0].mxu0
        %v1256 = vadd.f32 %v1081, %v1255
        %v1257 = vpop.f32.mrb[0].mxu0
        %v1258 = vpop.f32.mrb[0].mxu0
        %v1259 = vadd.f32 %v1084, %v1258
        %v1260 = vpop.f32.mrb[0].mxu0
        %1261 = vmatprep.mubr.bf16.mxu0 0
        %1262 = vmatmul.mubr.bf16.gmra.mrb[0].mxu0 %v938
        %v1263 = vpop.f32.mrb[0].mxu0
        %v1264 = vadd.f32 %v1089, %v1263
        %v1265 = vpop.f32.mrb[0].mxu0
        %v1266 = vpop.f32.mrb[0].mxu0
        %v1267 = vadd.f32 %v1092, %v1266
        %v1268 = vpop.f32.mrb[0].mxu0
        %1269 = vmatprep.mubr.bf16.mxu0 0
        %1270 = vmatmul.mubr.bf16.gmra.mrb[0].mxu0 %v940
        %v1271 = vpop.f32.mrb[0].mxu0
        %v1272 = vadd.f32 %v1097, %v1271
        %v1273 = vpop.f32.mrb[0].mxu0
        %v1274 = vpop.f32.mrb[0].mxu0
        %v1275 = vadd.f32 %v1100, %v1274
        %v1276 = vpop.f32.mrb[0].mxu0
        %1277 = vmatprep.mubr.bf16.mxu0 0
        %1278 = vmatmul.mubr.bf16.gmra.mrb[0].mxu0 %v942
        %v1279 = vpop.f32.mrb[0].mxu0
        %v1280 = vadd.f32 %v1105, %v1279
        %v1281 = vpop.f32.mrb[0].mxu0
        %v1282 = vpop.f32.mrb[0].mxu0
        %v1283 = vadd.f32 %v1108, %v1282
        %v1284 = vpop.f32.mrb[0].mxu0
        %1285 = vdwg.mxu0
        %s1286 = scalar_lea.vmem %s274, 24
        %v1287 = vld [vmem:[%s1286] sm:$0xf]
        %v1288 = vld [vmem:[%s1286 + $0x4] sm:$0xf]
        %v1289 = vld [vmem:[%s1286 + $0x8] sm:$0xf]
        %v1293 = vunpack.c.l.b16 %v1287
        %v1294 = vunpack.c.l.b16 %v1288
        %v1295 = vunpack.c.l.b16 %v1289
        %v1296 = vpack.c.b16 %v1294, %v1293
        %v1297 = vpack.c.b16 %v1295, %v1295
        %v1299 = vsel %vm913, %v896, 0
        %v1302 = vsel %vm946, %v1297, 0
        %1304 = vmatprep.subr.bf16.mxu0 0
        %1305 = vmatpush1.bf16.msra.mxu0 %v1296
        %1306 = vmatprep.subr.bf16.mxu0 0
        %1307 = vmatpush1.bf16.msra.mxu0 %v1302
        %1308 = vmatprep.subr.bf16.mxu0 0
        %1309 = vmatpush1.bf16.msra.mxu0 0
        %1310 = vmatprep.subr.bf16.mxu0 0
        %1311 = vmatpush1.bf16.msra.mxu0 0
        %1312 = vmatprep.subr.bf16.mxu0 0
        %1313 = vmatpush1.bf16.msra.mxu0 0
        %1314 = vmatprep.subr.bf16.mxu0 0
        %1315 = vmatpush1.bf16.msra.mxu0 0
        %1316 = vmatprep.subr.bf16.mxu0 0
        %1317 = vmatpush1.bf16.msra.mxu0 0
        %1318 = vmatprep.subr.bf16.mxu0 0
        %1319 = vmatpush1.bf16.msra.mxu0 0
        %1320 = vmatprep.subr.bf16.mxu0 0
        %1321 = vmatpush1.bf16.msra.mxu0 0
        %1322 = vmatprep.subr.bf16.mxu0 0
        %1323 = vmatpush1.bf16.msra.mxu0 0
        %1324 = vmatprep.subr.bf16.mxu0 0
        %1325 = vmatpush1.bf16.msra.mxu0 0
        %1326 = vmatprep.subr.bf16.mxu0 0
        %1327 = vmatpush1.bf16.msra.mxu0 0
        %1328 = vmatprep.subr.bf16.mxu0 0
        %1329 = vmatpush1.bf16.msra.mxu0 0
        %1330 = vmatprep.subr.bf16.mxu0 0
        %1331 = vmatpush1.bf16.msra.mxu0 0
        %1332 = vmatprep.subr.bf16.mxu0 0
        %1333 = vmatpush1.bf16.msra.mxu0 0
        %1334 = vmatprep.subr.bf16.mxu0 0
        %1335 = vmatpush1.bf16.msra.mxu0 0
        %1336 = vmatprep.mubr.bf16.mxu0 0
        %1337 = vmatmul.mubr.bf16.gmra.mrb[0].mxu0 %v916
        %v1338 = vpop.f32.mrb[0].mxu0
        %v1339 = vadd.f32 0.0, %v1338
        %v1340 = vpop.f32.mrb[0].mxu0
        %v1341 = vpop.f32.mrb[0].mxu0
        %v1342 = vadd.f32 0.0, %v1341
        %v1343 = vpop.f32.mrb[0].mxu0
        %1344 = vmatprep.mubr.bf16.mxu0 0
        %1345 = vmatmul.mubr.bf16.gmra.mrb[0].mxu0 %v918
        %v1346 = vpop.f32.mrb[0].mxu0
        %v1347 = vadd.f32 0.0, %v1346
        %v1348 = vpop.f32.mrb[0].mxu0
        %v1349 = vpop.f32.mrb[0].mxu0
        %v1350 = vadd.f32 0.0, %v1349
        %v1351 = vpop.f32.mrb[0].mxu0
        %1352 = vmatprep.mubr.bf16.mxu0 0
        %1353 = vmatmul.mubr.bf16.gmra.mrb[0].mxu0 %v920
        %v1354 = vpop.f32.mrb[0].mxu0
        %v1355 = vadd.f32 0.0, %v1354
        %v1356 = vpop.f32.mrb[0].mxu0
        %v1357 = vpop.f32.mrb[0].mxu0
        %v1358 = vadd.f32 0.0, %v1357
        %v1359 = vpop.f32.mrb[0].mxu0
        %1360 = vmatprep.mubr.bf16.mxu0 0
        %1361 = vmatmul.mubr.bf16.gmra.mrb[0].mxu0 %v922
        %v1362 = vpop.f32.mrb[0].mxu0
        %v1363 = vadd.f32 0.0, %v1362
        %v1364 = vpop.f32.mrb[0].mxu0
        %v1365 = vpop.f32.mrb[0].mxu0
        %v1366 = vadd.f32 0.0, %v1365
        %v1367 = vpop.f32.mrb[0].mxu0
        %1368 = vmatprep.mubr.bf16.mxu0 0
        %1369 = vmatmul.mubr.bf16.gmra.mrb[0].mxu0 %v924
        %v1370 = vpop.f32.mrb[0].mxu0
        %v1371 = vadd.f32 0.0, %v1370
        %v1372 = vpop.f32.mrb[0].mxu0
        %v1373 = vpop.f32.mrb[0].mxu0
        %v1374 = vadd.f32 0.0, %v1373
        %v1375 = vpop.f32.mrb[0].mxu0
        %1376 = vmatprep.mubr.bf16.mxu0 0
        %1377 = vmatmul.mubr.bf16.gmra.mrb[0].mxu0 %v926
        %v1378 = vpop.f32.mrb[0].mxu0
        %v1379 = vadd.f32 0.0, %v1378
        %v1380 = vpop.f32.mrb[0].mxu0
        %v1381 = vpop.f32.mrb[0].mxu0
        %v1382 = vadd.f32 0.0, %v1381
        %v1383 = vpop.f32.mrb[0].mxu0
        %1384 = vmatprep.mubr.bf16.mxu0 0
        %1385 = vmatmul.mubr.bf16.gmra.mrb[0].mxu0 %v928
        %v1386 = vpop.f32.mrb[0].mxu0
        %v1387 = vadd.f32 0.0, %v1386
        %v1388 = vpop.f32.mrb[0].mxu0
        %v1389 = vpop.f32.mrb[0].mxu0
        %v1390 = vadd.f32 0.0, %v1389
        %v1391 = vpop.f32.mrb[0].mxu0
        %1392 = vmatprep.mubr.bf16.mxu0 0
        %1393 = vmatmul.mubr.bf16.gmra.mrb[0].mxu0 %v930
        %v1394 = vpop.f32.mrb[0].mxu0
        %v1395 = vadd.f32 0.0, %v1394
        %v1396 = vpop.f32.mrb[0].mxu0
        %v1397 = vpop.f32.mrb[0].mxu0
        %v1398 = vadd.f32 0.0, %v1397
        %v1399 = vpop.f32.mrb[0].mxu0
        %1400 = vmatprep.mubr.bf16.mxu0 0
        %1401 = vmatmul.mubr.bf16.gmra.mrb[0].mxu0 %v932
        %v1402 = vpop.f32.mrb[0].mxu0
        %v1403 = vadd.f32 0.0, %v1402
        %v1404 = vpop.f32.mrb[0].mxu0
        %v1405 = vpop.f32.mrb[0].mxu0
        %v1406 = vadd.f32 0.0, %v1405
        %v1407 = vpop.f32.mrb[0].mxu0
        %1408 = vmatprep.mubr.bf16.mxu0 0
        %1409 = vmatmul.mubr.bf16.gmra.mrb[0].mxu0 %v934
        %v1410 = vpop.f32.mrb[0].mxu0
        %v1411 = vadd.f32 0.0, %v1410
        %v1412 = vpop.f32.mrb[0].mxu0
        %v1413 = vpop.f32.mrb[0].mxu0
        %v1414 = vadd.f32 0.0, %v1413
        %v1415 = vpop.f32.mrb[0].mxu0
        %1416 = vmatprep.mubr.bf16.mxu0 0
        %1417 = vmatmul.mubr.bf16.gmra.mrb[0].mxu0 %v936
        %v1418 = vpop.f32.mrb[0].mxu0
        %v1419 = vadd.f32 0.0, %v1418
        %v1420 = vpop.f32.mrb[0].mxu0
        %v1421 = vpop.f32.mrb[0].mxu0
        %v1422 = vadd.f32 0.0, %v1421
        %v1423 = vpop.f32.mrb[0].mxu0
        %1424 = vmatprep.mubr.bf16.mxu0 0
        %1425 = vmatmul.mubr.bf16.gmra.mrb[0].mxu0 %v938
        %v1426 = vpop.f32.mrb[0].mxu0
        %v1427 = vadd.f32 0.0, %v1426
        %v1428 = vpop.f32.mrb[0].mxu0
        %v1429 = vpop.f32.mrb[0].mxu0
        %v1430 = vadd.f32 0.0, %v1429
        %v1431 = vpop.f32.mrb[0].mxu0
        %1432 = vmatprep.mubr.bf16.mxu0 0
        %1433 = vmatmul.mubr.bf16.gmra.mrb[0].mxu0 %v940
        %v1434 = vpop.f32.mrb[0].mxu0
        %v1435 = vadd.f32 0.0, %v1434
        %v1436 = vpop.f32.mrb[0].mxu0
        %v1437 = vpop.f32.mrb[0].mxu0
        %v1438 = vadd.f32 0.0, %v1437
        %v1439 = vpop.f32.mrb[0].mxu0
        %1440 = vmatprep.mubr.bf16.mxu0 0
        %1441 = vmatmul.mubr.bf16.gmra.mrb[0].mxu0 %v942
        %v1442 = vpop.f32.mrb[0].mxu0
        %v1443 = vadd.f32 0.0, %v1442
        %v1444 = vpop.f32.mrb[0].mxu0
        %v1445 = vpop.f32.mrb[0].mxu0
        %v1446 = vadd.f32 0.0, %v1445
        %v1447 = vpop.f32.mrb[0].mxu0
        %1448 = vmatprep.mubr.bf16.mxu0 0
        %1449 = vmatmul.mubr.bf16.gmra.mrb[0].mxu0 %v944
        %v1450 = vpop.f32.mrb[0].mxu0
        %v1451 = vadd.f32 0.0, %v1450
        %v1452 = vpop.f32.mrb[0].mxu0
        %v1453 = vpop.f32.mrb[0].mxu0
        %v1454 = vadd.f32 0.0, %v1453
        %v1455 = vpop.f32.mrb[0].mxu0
        %1456 = vmatprep.mubr.bf16.mxu0 0
        %1457 = vmatmul.mubr.bf16.gmra.mrb[0].mxu0 %v1299
        %v1458 = vpop.f32.mrb[0].mxu0
        %v1459 = vadd.f32 0.0, %v1458
        %v1460 = vpop.f32.mrb[0].mxu0
        %v1461 = vpop.f32.mrb[0].mxu0
        %v1462 = vadd.f32 0.0, %v1461
        %v1463 = vpop.f32.mrb[0].mxu0
        %1464 = vdwg.mxu0
        %v1465 = vadd.f32 %v1160, %v1339
        %v1466 = vadd.f32 %v1163, %v1342
        %v1467 = vadd.f32 %v1168, %v1347
        %v1468 = vadd.f32 %v1171, %v1350
        %v1469 = vadd.f32 %v1176, %v1355
        %v1470 = vadd.f32 %v1179, %v1358
        %v1471 = vadd.f32 %v1184, %v1363
        %v1472 = vadd.f32 %v1187, %v1366
        %v1473 = vadd.f32 %v1192, %v1371
        %v1474 = vadd.f32 %v1195, %v1374
        %v1475 = vadd.f32 %v1200, %v1379
        %v1476 = vadd.f32 %v1203, %v1382
        %v1477 = vadd.f32 %v1208, %v1387
        %v1478 = vadd.f32 %v1211, %v1390
        %v1479 = vadd.f32 %v1216, %v1395
        %v1480 = vadd.f32 %v1219, %v1398
        %v1481 = vadd.f32 %v1224, %v1403
        %v1482 = vadd.f32 %v1227, %v1406
        %v1483 = vadd.f32 %v1232, %v1411
        %v1484 = vadd.f32 %v1235, %v1414
        %v1485 = vadd.f32 %v1240, %v1419
        %v1486 = vadd.f32 %v1243, %v1422
        %v1487 = vadd.f32 %v1248, %v1427
        %v1488 = vadd.f32 %v1251, %v1430
        %v1489 = vadd.f32 %v1256, %v1435
        %v1490 = vadd.f32 %v1259, %v1438
        %v1491 = vadd.f32 %v1264, %v1443
        %v1492 = vadd.f32 %v1267, %v1446
        %v1493 = vadd.f32 %v1272, %v1451
        %v1494 = vadd.f32 %v1275, %v1454
        %v1495 = vadd.f32 %v1280, %v1459
        %v1496 = vadd.f32 %v1283, %v1462
        %v1497 = vld [vmem:[%s2] sm:$0x1]
        %v1499 = vlaneseq
        %v1500 = vshrl.u32 %v1499, 7
        %v1501 = vsub.s32 0, %v1500
        %v1502 = vrot.slane %v1497, %v1501
        %v1504 = vadd.f32 %v1465, %v1502
        %v1505 = vadd.f32 %v1466, %v1502
        %v1506 = vadd.f32 %v1467, %v1502
        %v1507 = vadd.f32 %v1468, %v1502
        %v1508 = vadd.f32 %v1469, %v1502
        %v1509 = vadd.f32 %v1470, %v1502
        %v1510 = vadd.f32 %v1471, %v1502
        %v1511 = vadd.f32 %v1472, %v1502
        %v1512 = vadd.f32 %v1473, %v1502
        %v1513 = vadd.f32 %v1474, %v1502
        %v1514 = vadd.f32 %v1475, %v1502
        %v1515 = vadd.f32 %v1476, %v1502
        %v1516 = vadd.f32 %v1477, %v1502
        %v1517 = vadd.f32 %v1478, %v1502
        %v1518 = vadd.f32 %v1479, %v1502
        %v1519 = vadd.f32 %v1480, %v1502
        %v1520 = vadd.f32 %v1481, %v1502
        %v1521 = vadd.f32 %v1482, %v1502
        %v1522 = vadd.f32 %v1483, %v1502
        %v1523 = vadd.f32 %v1484, %v1502
        %v1524 = vadd.f32 %v1485, %v1502
        %v1525 = vadd.f32 %v1486, %v1502
        %v1526 = vadd.f32 %v1487, %v1502
        %v1527 = vadd.f32 %v1488, %v1502
        %v1528 = vadd.f32 %v1489, %v1502
        %v1529 = vadd.f32 %v1490, %v1502
        %v1530 = vadd.f32 %v1491, %v1502
        %v1531 = vadd.f32 %v1492, %v1502
        %v1532 = vadd.f32 %v1493, %v1502
        %v1533 = vadd.f32 %v1494, %v1502
        %v1534 = vadd.f32 %v1495, %v1502
        %v1535 = vadd.f32 %v1496, %v1502
        %vm1536 = vcmp.gt.f32.partialorder %v1504, 0.0
        %vm1537 = vcmp.gt.f32.partialorder %v1505, 0.0
        %vm1538 = vcmp.gt.f32.partialorder %v1506, 0.0
        %vm1539 = vcmp.gt.f32.partialorder %v1507, 0.0
        %vm1540 = vcmp.gt.f32.partialorder %v1508, 0.0
        %vm1541 = vcmp.gt.f32.partialorder %v1509, 0.0
        %vm1542 = vcmp.gt.f32.partialorder %v1510, 0.0
        %vm1543 = vcmp.gt.f32.partialorder %v1511, 0.0
        %vm1544 = vcmp.gt.f32.partialorder %v1512, 0.0
        %vm1545 = vcmp.gt.f32.partialorder %v1513, 0.0
        %vm1546 = vcmp.gt.f32.partialorder %v1514, 0.0
        %vm1547 = vcmp.gt.f32.partialorder %v1515, 0.0
        %vm1548 = vcmp.gt.f32.partialorder %v1516, 0.0
        %vm1549 = vcmp.gt.f32.partialorder %v1517, 0.0
        %vm1550 = vcmp.gt.f32.partialorder %v1518, 0.0
        %vm1551 = vcmp.gt.f32.partialorder %v1519, 0.0
        %vm1552 = vcmp.gt.f32.partialorder %v1520, 0.0
        %vm1553 = vcmp.gt.f32.partialorder %v1521, 0.0
        %vm1554 = vcmp.gt.f32.partialorder %v1522, 0.0
        %vm1555 = vcmp.gt.f32.partialorder %v1523, 0.0
        %vm1556 = vcmp.gt.f32.partialorder %v1524, 0.0
        %vm1557 = vcmp.gt.f32.partialorder %v1525, 0.0
        %vm1558 = vcmp.gt.f32.partialorder %v1526, 0.0
        %vm1559 = vcmp.gt.f32.partialorder %v1527, 0.0
        %vm1560 = vcmp.gt.f32.partialorder %v1528, 0.0
        %vm1561 = vcmp.gt.f32.partialorder %v1529, 0.0
        %vm1562 = vcmp.gt.f32.partialorder %v1530, 0.0
        %vm1563 = vcmp.gt.f32.partialorder %v1531, 0.0
        %vm1564 = vcmp.gt.f32.partialorder %v1532, 0.0
        %vm1565 = vcmp.gt.f32.partialorder %v1533, 0.0
        %vm1566 = vcmp.gt.f32.partialorder %v1534, 0.0
        %vm1567 = vcmp.gt.f32.partialorder %v1535, 0.0
        %v1568 = vmul.f32 %v1504, 0.1
        %v1569 = vmul.f32 %v1505, 0.1
        %v1570 = vmul.f32 %v1506, 0.1
        %v1571 = vmul.f32 %v1507, 0.1
        %v1572 = vmul.f32 %v1508, 0.1
        %v1573 = vmul.f32 %v1509, 0.1
        %v1574 = vmul.f32 %v1510, 0.1
        %v1575 = vmul.f32 %v1511, 0.1
        %v1576 = vmul.f32 %v1512, 0.1
        %v1577 = vmul.f32 %v1513, 0.1
        %v1578 = vmul.f32 %v1514, 0.1
        %v1579 = vmul.f32 %v1515, 0.1
        %v1580 = vmul.f32 %v1516, 0.1
        %v1581 = vmul.f32 %v1517, 0.1
        %v1582 = vmul.f32 %v1518, 0.1
        %v1583 = vmul.f32 %v1519, 0.1
        %v1584 = vmul.f32 %v1520, 0.1
        %v1585 = vmul.f32 %v1521, 0.1
        %v1586 = vmul.f32 %v1522, 0.1
        %v1587 = vmul.f32 %v1523, 0.1
        %v1588 = vmul.f32 %v1524, 0.1
        %v1589 = vmul.f32 %v1525, 0.1
        %v1590 = vmul.f32 %v1526, 0.1
        %v1591 = vmul.f32 %v1527, 0.1
        %v1592 = vmul.f32 %v1528, 0.1
        %v1593 = vmul.f32 %v1529, 0.1
        %v1594 = vmul.f32 %v1530, 0.1
        %v1595 = vmul.f32 %v1531, 0.1
        %v1596 = vmul.f32 %v1532, 0.1
        %v1597 = vmul.f32 %v1533, 0.1
        %v1598 = vmul.f32 %v1534, 0.1
        %v1599 = vmul.f32 %v1535, 0.1
        %v1600 = vsel %vm1536, %v1504, %v1568
        %v1601 = vsel %vm1537, %v1505, %v1569
        %v1602 = vsel %vm1538, %v1506, %v1570
        %v1603 = vsel %vm1539, %v1507, %v1571
        %v1604 = vsel %vm1540, %v1508, %v1572
        %v1605 = vsel %vm1541, %v1509, %v1573
        %v1606 = vsel %vm1542, %v1510, %v1574
        %v1607 = vsel %vm1543, %v1511, %v1575
        %v1608 = vsel %vm1544, %v1512, %v1576
        %v1609 = vsel %vm1545, %v1513, %v1577
        %v1610 = vsel %vm1546, %v1514, %v1578
        %v1611 = vsel %vm1547, %v1515, %v1579
        %v1612 = vsel %vm1548, %v1516, %v1580
        %v1613 = vsel %vm1549, %v1517, %v1581
        %v1614 = vsel %vm1550, %v1518, %v1582
        %v1615 = vsel %vm1551, %v1519, %v1583
        %v1616 = vsel %vm1552, %v1520, %v1584
        %v1617 = vsel %vm1553, %v1521, %v1585
        %v1618 = vsel %vm1554, %v1522, %v1586
        %v1619 = vsel %vm1555, %v1523, %v1587
        %v1620 = vsel %vm1556, %v1524, %v1588
        %v1621 = vsel %vm1557, %v1525, %v1589
        %v1622 = vsel %vm1558, %v1526, %v1590
        %v1623 = vsel %vm1559, %v1527, %v1591
        %v1624 = vsel %vm1560, %v1528, %v1592
        %v1625 = vsel %vm1561, %v1529, %v1593
        %v1626 = vsel %vm1562, %v1530, %v1594
        %v1627 = vsel %vm1563, %v1531, %v1595
        %v1628 = vsel %vm1564, %v1532, %v1596
        %v1629 = vsel %vm1565, %v1533, %v1597
        %v1630 = vsel %vm1566, %v1534, %v1598
        %v1631 = vsel %vm1567, %v1535, %v1599
        %v1632 = vpack.c.bf16 %v1601, %v1600
        %v1633 = vpack.c.bf16 %v1603, %v1602
        %v1634 = vpack.c.bf16 %v1605, %v1604
        %v1635 = vpack.c.bf16 %v1607, %v1606
        %v1636 = vpack.c.bf16 %v1609, %v1608
        %v1637 = vpack.c.bf16 %v1611, %v1610
        %v1638 = vpack.c.bf16 %v1613, %v1612
        %v1639 = vpack.c.bf16 %v1615, %v1614
        %v1640 = vpack.c.bf16 %v1617, %v1616
        %v1641 = vpack.c.bf16 %v1619, %v1618
        %v1642 = vpack.c.bf16 %v1621, %v1620
        %v1643 = vpack.c.bf16 %v1623, %v1622
        %v1644 = vpack.c.bf16 %v1625, %v1624
        %v1645 = vpack.c.bf16 %v1627, %v1626
        %v1646 = vpack.c.bf16 %v1629, %v1628
        %v1647 = vpack.c.bf16 %v1631, %v1630
        %v1648 = vld [vmem:[%s3] sm:$0xf]
        %v1649 = vld [vmem:[%s3 + $0x4] sm:$0xf]
        %v1650 = vld [vmem:[%s4] sm:$0x1]
        %v1652 = vlaneseq
        %v1653 = vshrl.u32 %v1652, 7
        %v1654 = vsub.s32 0, %v1653
        %v1655 = vrot.slane %v1650, %v1654
        %v1659 = vunpack.c.l.b16 %v1648
        %v1660 = vunpack.c.l.b16 %v1649
        %v1661 = vpack.c.b16 %v1660, %v1659
        %v1664 = vsel %vm860, %v1632, 0
        %v1667 = vsel %vm860, %v1633, 0
        %v1670 = vsel %vm860, %v1634, 0
        %v1673 = vsel %vm860, %v1635, 0
        %v1676 = vsel %vm860, %v1636, 0
        %v1679 = vsel %vm860, %v1637, 0
        %v1682 = vsel %vm860, %v1638, 0
        %v1685 = vsel %vm860, %v1639, 0
        %v1688 = vsel %vm860, %v1640, 0
        %v1691 = vsel %vm860, %v1641, 0
        %v1694 = vsel %vm860, %v1642, 0
        %v1697 = vsel %vm860, %v1643, 0
        %v1700 = vsel %vm860, %v1644, 0
        %v1703 = vsel %vm860, %v1645, 0
        %v1706 = vsel %vm860, %v1646, 0
        %v1709 = vsel %vm860, %v1647, 0
        %1711 = vmatprep.subr.bf16.mxu0 0
        %1712 = vmatpush1.bf16.msra.mxu0 %v1661
        %1713 = vmatprep.subr.bf16.mxu0 0
        %1714 = vmatpush1.bf16.msra.mxu0 0
        %1715 = vmatprep.subr.bf16.mxu0 0
        %1716 = vmatpush1.bf16.msra.mxu0 0
        %1717 = vmatprep.subr.bf16.mxu0 0
        %1718 = vmatpush1.bf16.msra.mxu0 0
        %1719 = vmatprep.subr.bf16.mxu0 0
        %1720 = vmatpush1.bf16.msra.mxu0 0
        %1721 = vmatprep.subr.bf16.mxu0 0
        %1722 = vmatpush1.bf16.msra.mxu0 0
        %1723 = vmatprep.subr.bf16.mxu0 0
        %1724 = vmatpush1.bf16.msra.mxu0 0
        %1725 = vmatprep.subr.bf16.mxu0 0
        %1726 = vmatpush1.bf16.msra.mxu0 0
        %1727 = vmatprep.subr.bf16.mxu0 0
        %1728 = vmatpush1.bf16.msra.mxu0 0
        %1729 = vmatprep.subr.bf16.mxu0 0
        %1730 = vmatpush1.bf16.msra.mxu0 0
        %1731 = vmatprep.subr.bf16.mxu0 0
        %1732 = vmatpush1.bf16.msra.mxu0 0
        %1733 = vmatprep.subr.bf16.mxu0 0
        %1734 = vmatpush1.bf16.msra.mxu0 0
        %1735 = vmatprep.subr.bf16.mxu0 0
        %1736 = vmatpush1.bf16.msra.mxu0 0
        %1737 = vmatprep.subr.bf16.mxu0 0
        %1738 = vmatpush1.bf16.msra.mxu0 0
        %1739 = vmatprep.subr.bf16.mxu0 0
        %1740 = vmatpush1.bf16.msra.mxu0 0
        %1741 = vmatprep.subr.bf16.mxu0 0
        %1742 = vmatpush1.bf16.msra.mxu0 0
        %1743 = vmatprep.mubr.bf16.mxu0 0
        %1744 = vmatmul.mubr.bf16.gmra.mrb[0].mxu0 %v1664
        %v1745 = vpop.f32.mrb[0].mxu0
        %v1746 = vadd.f32 %v1655, %v1745
        %v1747 = vpop.f32.mrb[0].mxu0
        %v1748 = vpop.f32.mrb[0].mxu0
        %v1749 = vadd.f32 %v1655, %v1748
        %v1750 = vpop.f32.mrb[0].mxu0
        %1751 = vmatprep.mubr.bf16.mxu0 0
        %1752 = vmatmul.mubr.bf16.gmra.mrb[0].mxu0 %v1667
        %v1753 = vpop.f32.mrb[0].mxu0
        %v1754 = vadd.f32 %v1655, %v1753
        %v1755 = vpop.f32.mrb[0].mxu0
        %v1756 = vpop.f32.mrb[0].mxu0
        %v1757 = vadd.f32 %v1655, %v1756
        %v1758 = vpop.f32.mrb[0].mxu0
        %1759 = vmatprep.mubr.bf16.mxu0 0
        %1760 = vmatmul.mubr.bf16.gmra.mrb[0].mxu0 %v1670
        %v1761 = vpop.f32.mrb[0].mxu0
        %v1762 = vadd.f32 %v1655, %v1761
        %v1763 = vpop.f32.mrb[0].mxu0
        %v1764 = vpop.f32.mrb[0].mxu0
        %v1765 = vadd.f32 %v1655, %v1764
        %v1766 = vpop.f32.mrb[0].mxu0
        %1767 = vmatprep.mubr.bf16.mxu0 0
        %1768 = vmatmul.mubr.bf16.gmra.mrb[0].mxu0 %v1673
        %v1769 = vpop.f32.mrb[0].mxu0
        %v1770 = vadd.f32 %v1655, %v1769
        %v1771 = vpop.f32.mrb[0].mxu0
        %v1772 = vpop.f32.mrb[0].mxu0
        %v1773 = vadd.f32 %v1655, %v1772
        %v1774 = vpop.f32.mrb[0].mxu0
        %1775 = vmatprep.mubr.bf16.mxu0 0
        %1776 = vmatmul.mubr.bf16.gmra.mrb[0].mxu0 %v1676
        %v1777 = vpop.f32.mrb[0].mxu0
        %v1778 = vadd.f32 %v1655, %v1777
        %v1779 = vpop.f32.mrb[0].mxu0
        %v1780 = vpop.f32.mrb[0].mxu0
        %v1781 = vadd.f32 %v1655, %v1780
        %v1782 = vpop.f32.mrb[0].mxu0
        %1783 = vmatprep.mubr.bf16.mxu0 0
        %1784 = vmatmul.mubr.bf16.gmra.mrb[0].mxu0 %v1679
        %v1785 = vpop.f32.mrb[0].mxu0
        %v1786 = vadd.f32 %v1655, %v1785
        %v1787 = vpop.f32.mrb[0].mxu0
        %v1788 = vpop.f32.mrb[0].mxu0
        %v1789 = vadd.f32 %v1655, %v1788
        %v1790 = vpop.f32.mrb[0].mxu0
        %1791 = vmatprep.mubr.bf16.mxu0 0
        %1792 = vmatmul.mubr.bf16.gmra.mrb[0].mxu0 %v1682
        %v1793 = vpop.f32.mrb[0].mxu0
        %v1794 = vadd.f32 %v1655, %v1793
        %v1795 = vpop.f32.mrb[0].mxu0
        %v1796 = vpop.f32.mrb[0].mxu0
        %v1797 = vadd.f32 %v1655, %v1796
        %v1798 = vpop.f32.mrb[0].mxu0
        %1799 = vmatprep.mubr.bf16.mxu0 0
        %1800 = vmatmul.mubr.bf16.gmra.mrb[0].mxu0 %v1685
        %v1801 = vpop.f32.mrb[0].mxu0
        %v1802 = vadd.f32 %v1655, %v1801
        %v1803 = vpop.f32.mrb[0].mxu0
        %v1804 = vpop.f32.mrb[0].mxu0
        %v1805 = vadd.f32 %v1655, %v1804
        %v1806 = vpop.f32.mrb[0].mxu0
        %1807 = vmatprep.mubr.bf16.mxu0 0
        %1808 = vmatmul.mubr.bf16.gmra.mrb[0].mxu0 %v1688
        %v1809 = vpop.f32.mrb[0].mxu0
        %v1810 = vadd.f32 %v1655, %v1809
        %v1811 = vpop.f32.mrb[0].mxu0
        %v1812 = vpop.f32.mrb[0].mxu0
        %v1813 = vadd.f32 %v1655, %v1812
        %v1814 = vpop.f32.mrb[0].mxu0
        %1815 = vmatprep.mubr.bf16.mxu0 0
        %1816 = vmatmul.mubr.bf16.gmra.mrb[0].mxu0 %v1691
        %v1817 = vpop.f32.mrb[0].mxu0
        %v1818 = vadd.f32 %v1655, %v1817
        %v1819 = vpop.f32.mrb[0].mxu0
        %v1820 = vpop.f32.mrb[0].mxu0
        %v1821 = vadd.f32 %v1655, %v1820
        %v1822 = vpop.f32.mrb[0].mxu0
        %1823 = vmatprep.mubr.bf16.mxu0 0
        %1824 = vmatmul.mubr.bf16.gmra.mrb[0].mxu0 %v1694
        %v1825 = vpop.f32.mrb[0].mxu0
        %v1826 = vadd.f32 %v1655, %v1825
        %v1827 = vpop.f32.mrb[0].mxu0
        %v1828 = vpop.f32.mrb[0].mxu0
        %v1829 = vadd.f32 %v1655, %v1828
        %v1830 = vpop.f32.mrb[0].mxu0
        %1831 = vmatprep.mubr.bf16.mxu0 0
        %1832 = vmatmul.mubr.bf16.gmra.mrb[0].mxu0 %v1697
        %v1833 = vpop.f32.mrb[0].mxu0
        %v1834 = vadd.f32 %v1655, %v1833
        %v1835 = vpop.f32.mrb[0].mxu0
        %v1836 = vpop.f32.mrb[0].mxu0
        %v1837 = vadd.f32 %v1655, %v1836
        %v1838 = vpop.f32.mrb[0].mxu0
        %1839 = vmatprep.mubr.bf16.mxu0 0
        %1840 = vmatmul.mubr.bf16.gmra.mrb[0].mxu0 %v1700
        %v1841 = vpop.f32.mrb[0].mxu0
        %v1842 = vadd.f32 %v1655, %v1841
        %v1843 = vpop.f32.mrb[0].mxu0
        %v1844 = vpop.f32.mrb[0].mxu0
        %v1845 = vadd.f32 %v1655, %v1844
        %v1846 = vpop.f32.mrb[0].mxu0
        %1847 = vmatprep.mubr.bf16.mxu0 0
        %1848 = vmatmul.mubr.bf16.gmra.mrb[0].mxu0 %v1703
        %v1849 = vpop.f32.mrb[0].mxu0
        %v1850 = vadd.f32 %v1655, %v1849
        %v1851 = vpop.f32.mrb[0].mxu0
        %v1852 = vpop.f32.mrb[0].mxu0
        %v1853 = vadd.f32 %v1655, %v1852
        %v1854 = vpop.f32.mrb[0].mxu0
        %1855 = vmatprep.mubr.bf16.mxu0 0
        %1856 = vmatmul.mubr.bf16.gmra.mrb[0].mxu0 %v1706
        %v1857 = vpop.f32.mrb[0].mxu0
        %v1858 = vadd.f32 %v1655, %v1857
        %v1859 = vpop.f32.mrb[0].mxu0
        %v1860 = vpop.f32.mrb[0].mxu0
        %v1861 = vadd.f32 %v1655, %v1860
        %v1862 = vpop.f32.mrb[0].mxu0
        %1863 = vmatprep.mubr.bf16.mxu0 0
        %1864 = vmatmul.mubr.bf16.gmra.mrb[0].mxu0 %v1709
        %v1865 = vpop.f32.mrb[0].mxu0
        %v1866 = vadd.f32 %v1655, %v1865
        %v1867 = vpop.f32.mrb[0].mxu0
        %v1868 = vpop.f32.mrb[0].mxu0
        %v1869 = vadd.f32 %v1655, %v1868
        %v1870 = vpop.f32.mrb[0].mxu0
        %1871 = vdwg.mxu0
        %1872 = vst [vmem:[%s261] sm:$0xff] %v1746
        %1873 = vst [vmem:[%s261 + $0x8] sm:$0xff] %v1749
        %1874 = vst [vmem:[%s261 + $0x10] sm:$0xff] %v1754
        %1875 = vst [vmem:[%s261 + $0x18] sm:$0xff] %v1757
        %1876 = vst [vmem:[%s261 + $0x20] sm:$0xff] %v1762
        %1877 = vst [vmem:[%s261 + $0x28] sm:$0xff] %v1765
        %1878 = vst [vmem:[%s261 + $0x30] sm:$0xff] %v1770
        %1879 = vst [vmem:[%s261 + $0x38] sm:$0xff] %v1773
        %1880 = vst [vmem:[%s261 + $0x40] sm:$0xff] %v1778
        %1881 = vst [vmem:[%s261 + $0x48] sm:$0xff] %v1781
        %1882 = vst [vmem:[%s261 + $0x50] sm:$0xff] %v1786
        %1883 = vst [vmem:[%s261 + $0x58] sm:$0xff] %v1789
        %1884 = vst [vmem:[%s261 + $0x60] sm:$0xff] %v1794
        %1885 = vst [vmem:[%s261 + $0x68] sm:$0xff] %v1797
        %1886 = vst [vmem:[%s261 + $0x70] sm:$0xff] %v1802
        %1887 = vst [vmem:[%s261 + $0x78] sm:$0xff] %v1805
        %1888 = vst [vmem:[%s261 + $0x80] sm:$0xff] %v1810
        %1889 = vst [vmem:[%s261 + $0x88] sm:$0xff] %v1813
        %1890 = vst [vmem:[%s261 + $0x90] sm:$0xff] %v1818
        %1891 = vst [vmem:[%s261 + $0x98] sm:$0xff] %v1821
        %1892 = vst [vmem:[%s261 + $0xa0] sm:$0xff] %v1826
        %1893 = vst [vmem:[%s261 + $0xa8] sm:$0xff] %v1829
        %1894 = vst [vmem:[%s261 + $0xb0] sm:$0xff] %v1834
        %1895 = vst [vmem:[%s261 + $0xb8] sm:$0xff] %v1837
        %1896 = vst [vmem:[%s261 + $0xc0] sm:$0xff] %v1842
        %1897 = vst [vmem:[%s261 + $0xc8] sm:$0xff] %v1845
        %1898 = vst [vmem:[%s261 + $0xd0] sm:$0xff] %v1850
        %1899 = vst [vmem:[%s261 + $0xd8] sm:$0xff] %v1853
        %1900 = vst [vmem:[%s261 + $0xe0] sm:$0xff] %v1858
        %1901 = vst [vmem:[%s261 + $0xe8] sm:$0xff] %v1861
        %1902 = vst [vmem:[%s261 + $0xf0] sm:$0xff] %v1866
        %1903 = vst [vmem:[%s261 + $0xf8] sm:$0xff] %v1869
        %s1904 = sand.u32 %s165, 1
        %s1905 = scalar_lea.sflag [#allocation3], %s1904
        %s1906 = sand.u32 %s165, 1
        %s1907 = smul.addr %s1906, 256
        %s1908 = scalar_lea.vmem [#allocation2], %s1907
        // Predicated region
        $region41: #{tpu_custom_call.1} parent=39 // pred_check
          %p1909 = pneg %p175
        $region42: #{tpu_custom_call.1} parent=39 // pred_check_branch
          %1911 = sbr.rel (%p1909) target = $region44
        $region43: #{tpu_custom_call.1} parent=39 // pred_region
          %s1912 = smul.u32 16, %s25
          %s1914 = ssub.s32 4096, 4096
          %1915 = vsyncadd %s1905, %s1914
          %s1916 = smul.addr %s1912, 2
          %s1917 = smul.addr %s24, 32
          %s1918 = sadd.s32 %s1916, %s1917
          %s1919 = smul.addr %s1918, 128
          %s1920 = scalar_lea.hbm %s5, %s1919
          %s1921 = sshll.u32 %s1908, 4
          %s1922 = int_to_ptr.vmem [resolvable:$true] %s1921
          %1927 = dma.vmem_to_hbm [thread:$0]  %s1922, 4096, %s1920, %s1905, 128, 128, 8
        $region44: #{tpu_custom_call.1} parent=39 // pred_fallthru
          _
      $region40: #{tpu_custom_call.1} parent=5 // pred_fallthru
        _
      %p1928 = scmp.le.s32.totalorder 2, %s14
      // Predicated region
      $region45: #{tpu_custom_call.1} parent=5 // pred_check
        %p1929 = pneg %p1928
      $region46: #{tpu_custom_call.1} parent=5 // pred_check_branch
        %1931 = sbr.rel (%p1929) target = $region48
      $region47: #{tpu_custom_call.1} parent=5 // pred_region
        %s1932 = ssub.s32 %s14, 2
        // Predicated region
        $region49: #{tpu_custom_call.1} parent=47 // pred_check
          %p1933 = pneg %p181
        $region50: #{tpu_custom_call.1} parent=47 // pred_check_branch
          %1935 = sbr.rel (%p1933) target = $region52
        $region51: #{tpu_custom_call.1} parent=47 // pred_region
          %s1936 = sand.u32 %s166, 1
          %s1937 = scalar_lea.sflag [#allocation3], %s1936
          %s1938 = sand.u32 %s166, 1
          %s1939 = smul.addr %s1938, 256
          %s1940 = scalar_lea.vmem [#allocation2], %s1939
          %1941 = dma.done %s1937, 4096
        $region52: #{tpu_custom_call.1} parent=47 // pred_fallthru
          _
      $region48: #{tpu_custom_call.1} parent=5 // pred_fallthru
        _
    $region6: #{tpu_custom_call.1} parent=1 // loop_footer
      %s18 = sadd.s32 1, %s14
    $region7: #{tpu_custom_call.1} parent=1 // loop_footer_branch
      %13 = sbr.rel target = $region3
    $region8: #{tpu_custom_call.1} parent=1 // loop_exit
      _
    %1942 = vsyncpa [#allocation3], 1
    %s1943 = scalar_lea.sflag [#allocation3], 1
    %1944 = vsyncpa %s1943, 1

</llo_original>
